<compile_context>
chip_gen: v7x
topology: tpu7x:2x2x1
jax: 0.10.0
libtpu: 0.0.40
codegen_flags: <defaults>
</compile_context>

<pallas_src>
import numpy as np
import jax
import jax.numpy as jnp
from jax.experimental import pallas as pl
from jax.experimental.pallas import tpu as pltpu


def _round_up(v, m):
    return ((v + m - 1) // m) * m


def _interaction_aggregation_kernel(x_ref, y_ref, wxa_ref, wya_ref,
                                    sp_ref, b_ref, o_ref):
    opad = sp_ref.shape[1]                      # 128 (lane-dense output width)
    # Two augmented MXU passes (linear + bilinear columns fused):
    #   tx[:, :opad] = x @ [Wx.T | 0]      tx[:, opad:] = bilinear intermediate
    #   ty[:, :opad] = y @ [Wy.T | 0]      ty[:, opad:] = expanded y
    tx = jnp.dot(x_ref[...], wxa_ref[...], preferred_element_type=jnp.float32)
    ty = jnp.dot(y_ref[...], wya_ref[...], preferred_element_type=jnp.float32)

    # Linear part: static, lane-aligned slice — no selector matmul.
    lin = tx[:, :opad] + ty[:, :opad]

    # Bilinear part: elementwise product, then ONE lane-dense 0/1 segmented-sum
    # matmul (K, 128).  Cast the product to the selector dtype (bf16 when the
    # inputs are bf16) so the MXU gets a native operand; accumulation stays f32.
    prod = (tx[:, opad:] * ty[:, opad:]).astype(sp_ref.dtype)
    bil = jnp.dot(prod, sp_ref[...], preferred_element_type=jnp.float32)

    o_ref[...] = (bil + lin + b_ref[...]).astype(o_ref.dtype)


def interaction_aggregation(x, y, wx, bx, wy, by, w_xy, *,
                            num_heads, output_dim, block_batch=2048,
                            out_dtype=jnp.float32):
    """Forward of InteractionAggregation.

    x: (B, x_dim), y: (B, y_dim)
    wx: (O, x_dim), bx: (O,)      -- nn.Linear(x_dim, O) params
    wy: (O, y_dim), by: (O,)      -- nn.Linear(y_dim, O) params
    w_xy: (H*hx*hy, O)            -- bilinear parameter (PyTorch layout)
    """
    B, Dx = x.shape
    Dy = y.shape[1]
    H, O = num_heads, output_dim
    hx, hy = Dx // H, Dy // H
    K = H * O * hy                     # bilinear intermediate width
    OPAD = 128                         # lane-dense linear/output block width
    W = OPAD + K                       # augmented weight width

    x_item = jnp.dtype(x.dtype).itemsize
    y_item = jnp.dtype(y.dtype).itemsize
    out_item = jnp.dtype(out_dtype).itemsize
    red_dtype = jnp.bfloat16 if jnp.dtype(x.dtype) == jnp.bfloat16 else jnp.float32
    red_item = jnp.dtype(red_dtype).itemsize

    # ---------------- trace-time parameter glue (tiny arrays) ----------------
    # Effective bilinear tensor in PyTorch's view() ordering:
    # V[h, i, o*hy + j] multiplies x[., h*hx+i] * y[., h*hy+j] for output o.
    wxy_k = w_xy.reshape(H, hx, O * hy)
    w_big = jnp.zeros((Dx, K), w_xy.dtype)          # block-diagonal (Dx, K)
    for h in range(H):
        w_big = w_big.at[h * hx:(h + 1) * hx,
                         h * O * hy:(h + 1) * O * hy].set(wxy_k[h])

    ks = np.arange(K)
    h_idx = ks // (O * hy)
    o_idx = (ks % (O * hy)) // hy
    j_idx = ks % hy

    # Linear columns FIRST (lane-aligned slice in the kernel), padded to 128.
    wx_lin = jnp.zeros((Dx, OPAD), w_xy.dtype).at[:, :O].set(wx.T)
    wy_lin = jnp.zeros((Dy, OPAD), w_xy.dtype).at[:, :O].set(wy.T)

    # 0/1 expansion (Dy, K): (y @ G)[b, k] == y[b, h*hy + j].
    g = np.zeros((Dy, K), np.float32)
    g[h_idx * hy + j_idx, ks] = 1.0

    wx_aug = jnp.concatenate([wx_lin, w_big], axis=1).astype(x.dtype)       # (Dx, W)
    wy_aug = jnp.concatenate([wy_lin, jnp.asarray(g, w_xy.dtype)],
                             axis=1).astype(y.dtype)                        # (Dy, W)

    # Segmented-sum selector, padded to a lane-dense 128-wide output.
    s_prod = np.zeros((K, OPAD), np.float32)
    s_prod[ks, o_idx] = 1.0
    s_prod = jnp.asarray(s_prod, red_dtype)

    bias = jnp.zeros((1, OPAD), jnp.float32).at[0, :O].set(bx + by)

    # ---------------- generation-aware tiling & VMEM budget ----------------
    try:
        vmem_cap = int(getattr(pltpu.get_tpu_info(), "vmem_capacity_bytes",
                               64 << 20))
    except Exception:
        vmem_cap = 64 << 20            # conservative (v7x per-core VMEM)
    budget = int(0.70 * vmem_cap)

    packing = max(1, 4 // x_item)      # sublane packing: f32=1, bf16=2, int8=4
    sub_align = 8 * packing

    def vmem_need(tb):
        blk = tb * (Dx * x_item + Dy * y_item + OPAD * out_item)       # x/y/out blocks
        wgt = (Dx * W * x_item + Dy * W * y_item + K * OPAD * red_item + OPAD * 4)
        inter = tb * (2 * W * 4 + 3 * OPAD * 4 + K * red_item)         # tx, ty, lin, bil, prod
        return 2 * blk + 2 * wgt + inter + (2 << 20)                   # double-buffer + slack

    tb = max(min(block_batch, B), sub_align)
    if B >= 256:                       # guarantee >=2 grid steps (v7x megacore)
        tb = min(tb, _round_up(pl.cdiv(B, 2), 128))
    if tb >= 256:                      # MXU-aligned M (256 on v6e/v7x, also /128 for v5e)
        tb = _round_up(tb, 256)
    elif tb >= 128:
        tb = _round_up(tb, 128)
    else:
        tb = _round_up(tb, sub_align)
    while vmem_need(tb) > budget and tb > sub_align:
        tb = max(sub_align, _round_up(tb // 2, sub_align))

    B_pad = pl.cdiv(B, tb) * tb
    if B_pad != B:
        x = jnp.pad(x, ((0, B_pad - B), (0, 0)))
        y = jnp.pad(y, ((0, B_pad - B), (0, 0)))
    grid = (B_pad // tb,)

    need = vmem_need(tb)
    vmem_limit = int(max(need, min(budget, need + (8 << 20))))   # never below need

    flops = (2 * B_pad * (Dx + Dy) * W          # two augmented matmuls
             + 2 * B_pad * K * OPAD             # segmented-sum matmul
             + B_pad * (K + 3 * OPAD))          # elementwise mul / adds
    bytes_accessed = (B_pad * (Dx * x_item + Dy * y_item)
                      + Dx * W * x_item + Dy * W * y_item
                      + K * OPAD * red_item + OPAD * 4
                      + B_pad * OPAD * out_item)
    cost = pl.CostEstimate(flops=flops, transcendentals=0,
                           bytes_accessed=bytes_accessed)

    def _specs(single_buffer_consts):
        pm = {"pipeline_mode": pl.Buffered(1)} if single_buffer_consts else {}
        return [
            pl.BlockSpec((tb, Dx), lambda i: (i, 0)),          # x (batch-tiled)
            pl.BlockSpec((tb, Dy), lambda i: (i, 0)),          # y (batch-tiled)
            pl.BlockSpec((Dx, W), lambda i: (0, 0), **pm),     # resident weights
            pl.BlockSpec((Dy, W), lambda i: (0, 0), **pm),
            pl.BlockSpec((K, OPAD), lambda i: (0, 0), **pm),
            pl.BlockSpec((1, OPAD), lambda i: (0, 0), **pm),
        ]

    def _call(single_buffer_consts):
        return pl.pallas_call(
            _interaction_aggregation_kernel,
            out_shape=jax.ShapeDtypeStruct((B_pad, OPAD), out_dtype),
            grid=grid,
            in_specs=_specs(single_buffer_consts),
            out_specs=pl.BlockSpec((tb, OPAD), lambda i: (i, 0)),
            compiler_params=pltpu.CompilerParams(
                dimension_semantics=("parallel",),
                vmem_limit_bytes=vmem_limit,
            ),
            cost_estimate=cost,
        )(x, y, wx_aug, wy_aug, s_prod, bias)

    try:
        out = _call(True)     # constants single-buffered (saves VMEM, esp. v7x)
    except Exception:
        out = _call(False)    # fallback if Buffered(1) is rejected on this build

    return out[:B, :O]


def reference(x, y, wx, bx, wy, by, w_xy, num_heads, output_dim):
    """Pure-JAX transcription of the exact PyTorch forward (incl. view order)."""
    prec = jax.lax.Precision.HIGHEST
    B = x.shape[0]
    hx = x.shape[1] // num_heads
    hy = y.shape[1] // num_heads
    out = (jnp.dot(x, wx.T, precision=prec) + bx
           + jnp.dot(y, wy.T, precision=prec) + by)
    head_x = x.reshape(B, num_heads, hx)
    head_y = y.reshape(B, num_heads, hy)
    t = jnp.matmul(head_x[:, :, None, :],
                   w_xy.reshape(num_heads, hx, -1), precision=prec)
    t = t.reshape(B, num_heads, output_dim, hy)
    xy = jnp.matmul(t, head_y[..., None], precision=prec)[..., 0]   # (B, H, O)
    return out + xy.sum(axis=1)


if __name__ == "__main__":
    # Small shapes consistent with the module; batch large enough to exercise
    # the batch-tiled, pipelined grid (grid = 2 with block_batch=128).
    batch = 256
    x_dim = 32
    y_dim = 16
    num_heads = 2
    output_dim = 4
    hx = x_dim // num_heads
    hy = y_dim // num_heads

    key = jax.random.PRNGKey(0)
    kx, ky, kwx, kbx, kwy, kby, kwxy = jax.random.split(key, 7)

    x = jax.random.normal(kx, (batch, x_dim), jnp.float32)
    y = jax.random.normal(ky, (batch, y_dim), jnp.float32)
    wx = jax.random.normal(kwx, (output_dim, x_dim), jnp.float32) * 0.1   # nn.Linear weight
    bx = jax.random.normal(kbx, (output_dim,), jnp.float32) * 0.1         # nn.Linear bias
    wy = jax.random.normal(kwy, (output_dim, y_dim), jnp.float32) * 0.1
    by = jax.random.normal(kby, (output_dim,), jnp.float32) * 0.1
    fan_in, fan_out = num_heads * hx * hy, output_dim
    std = (2.0 / (fan_in + fan_out)) ** 0.5
    w_xy = jax.random.normal(kwxy, (num_heads * hx * hy, output_dim), jnp.float32) * std

    out = interaction_aggregation(
        x, y, wx, bx, wy, by, w_xy,
        num_heads=num_heads, output_dim=output_dim, block_batch=128,
    )
    out = jax.block_until_ready(out)

    ref = jax.block_until_ready(
        reference(x, y, wx, bx, wy, by, w_xy, num_heads, output_dim))

    assert out.shape == (batch, output_dim)
    max_err = float(jnp.max(jnp.abs(out - ref)))
    rel_err = float(jnp.linalg.norm(out - ref) / jnp.linalg.norm(ref))
    # Tolerance covers possible reduced-precision MXU passes for f32 operands.
    assert jnp.allclose(out, ref, rtol=3e-2, atol=3e-2), (max_err, rel_err)
    assert rel_err < 1e-2, (max_err, rel_err)
    print("KERNEL_OK")
</pallas_src>

<mosaic_0001>
module attributes {stable_mosaic.version = 11 : i64} {
  func.func @_interaction_aggregation_kernel(%arg0: i32, %arg1: memref<128x32xf32, #tpu.memory_space<vmem>>, %arg2: memref<128x16xf32, #tpu.memory_space<vmem>>, %arg3: memref<32x192xf32, #tpu.memory_space<vmem>>, %arg4: memref<16x192xf32, #tpu.memory_space<vmem>>, %arg5: memref<64x128xf32, #tpu.memory_space<vmem>>, %arg6: memref<1x128xf32, #tpu.memory_space<vmem>>, %arg7: memref<128x128xf32, #tpu.memory_space<vmem>>) attributes {dimension_semantics = [#tpu.dimension_semantics<parallel>], iteration_bounds = array<i64: 2>, scalar_prefetch = 0 : i64, scratch_operands = 0 : i64, tpu.core_type = #tpu.core_type<tc>, window_params = [{transform_indices = @transform_0, window_bounds = array<i64: 128, 32>}, {transform_indices = @transform_1, window_bounds = array<i64: 128, 16>}, {pipeline_mode = #tpu.pipeline_mode<synchronous>, transform_indices = @transform_2, window_bounds = array<i64: 32, 192>}, {pipeline_mode = #tpu.pipeline_mode<synchronous>, transform_indices = @transform_3, window_bounds = array<i64: 16, 192>}, {pipeline_mode = #tpu.pipeline_mode<synchronous>, transform_indices = @transform_4, window_bounds = array<i64: 64, 128>}, {pipeline_mode = #tpu.pipeline_mode<synchronous>, transform_indices = @transform_5, window_bounds = array<i64: 1, 128>}, {transform_indices = @transform_6, window_bounds = array<i64: 128, 128>}]} {
    %c0 = arith.constant 0 : index
    %c0_0 = arith.constant 0 : index
    %0 = vector.load %arg1[%c0, %c0_0] : memref<128x32xf32, #tpu.memory_space<vmem>>, vector<128x32xf32>
    %c0_1 = arith.constant 0 : index
    %c0_2 = arith.constant 0 : index
    %1 = vector.load %arg3[%c0_1, %c0_2] : memref<32x192xf32, #tpu.memory_space<vmem>>, vector<32x192xf32>
    %cst = arith.constant dense<0.000000e+00> : vector<128x192xf32>
    %2 = tpu.matmul %0, %1, %cst {dimension_numbers = #tpu.dot_dimension_numbers<[1], [0], [0], [1], [0, 0, 1, 1], [], []>} : vector<128x32xf32>, vector<32x192xf32>, vector<128x192xf32> -> vector<128x192xf32>
    %c0_3 = arith.constant 0 : index
    %c0_4 = arith.constant 0 : index
    %3 = vector.load %arg2[%c0_3, %c0_4] : memref<128x16xf32, #tpu.memory_space<vmem>>, vector<128x16xf32>
    %c0_5 = arith.constant 0 : index
    %c0_6 = arith.constant 0 : index
    %4 = vector.load %arg4[%c0_5, %c0_6] : memref<16x192xf32, #tpu.memory_space<vmem>>, vector<16x192xf32>
    %cst_7 = arith.constant dense<0.000000e+00> : vector<128x192xf32>
    %5 = tpu.matmul %3, %4, %cst_7 {dimension_numbers = #tpu.dot_dimension_numbers<[1], [0], [0], [1], [0, 0, 1, 1], [], []>} : vector<128x16xf32>, vector<16x192xf32>, vector<128x192xf32> -> vector<128x192xf32>
    %6 = vector.extract_strided_slice %2 {offsets = [0, 0], sizes = [128, 128], strides = [1, 1]} : vector<128x192xf32> to vector<128x128xf32>
    %7 = vector.extract_strided_slice %5 {offsets = [0, 0], sizes = [128, 128], strides = [1, 1]} : vector<128x192xf32> to vector<128x128xf32>
    %8 = arith.addf %6, %7 : vector<128x128xf32>
    %9 = vector.extract_strided_slice %2 {offsets = [0, 128], sizes = [128, 64], strides = [1, 1]} : vector<128x192xf32> to vector<128x64xf32>
    %10 = vector.extract_strided_slice %5 {offsets = [0, 128], sizes = [128, 64], strides = [1, 1]} : vector<128x192xf32> to vector<128x64xf32>
    %11 = arith.mulf %9, %10 : vector<128x64xf32>
    %c0_8 = arith.constant 0 : index
    %c0_9 = arith.constant 0 : index
    %12 = vector.load %arg5[%c0_8, %c0_9] : memref<64x128xf32, #tpu.memory_space<vmem>>, vector<64x128xf32>
    %cst_10 = arith.constant dense<0.000000e+00> : vector<128x128xf32>
    %13 = tpu.matmul %11, %12, %cst_10 {dimension_numbers = #tpu.dot_dimension_numbers<[1], [0], [0], [1], [0, 0, 1, 1], [], []>} : vector<128x64xf32>, vector<64x128xf32>, vector<128x128xf32> -> vector<128x128xf32>
    %14 = arith.addf %13, %8 : vector<128x128xf32>
    %c0_11 = arith.constant 0 : index
    %c0_12 = arith.constant 0 : index
    %15 = vector.load %arg6[%c0_11, %c0_12] : memref<1x128xf32, #tpu.memory_space<vmem>>, vector<1x128xf32>
    %16 = vector.broadcast %15 : vector<1x128xf32> to vector<128x128xf32>
    %17 = arith.addf %14, %16 : vector<128x128xf32>
    %c0_13 = arith.constant 0 : index
    %c0_14 = arith.constant 0 : index
    %18 = vector.load %arg7[%c0_13, %c0_14] : memref<128x128xf32, #tpu.memory_space<vmem>>, vector<128x128xf32>
    tpu.vector_store %arg7[%c0_13, %c0_14], %17 {strides = array<i32>} : memref<128x128xf32, #tpu.memory_space<vmem>>, vector<128x128xf32>,
    return
  }
  func.func @transform_0(%arg0: i32) -> (i32, i32) {
    %c0_i32 = arith.constant 0 : i32
    %c0_i32_0 = arith.constant 0 : i32
    return %arg0, %c0_i32 : i32, i32
  }
  func.func @transform_1(%arg0: i32) -> (i32, i32) {
    %c0_i32 = arith.constant 0 : i32
    %c0_i32_0 = arith.constant 0 : i32
    return %arg0, %c0_i32 : i32, i32
  }
  func.func @transform_2(%arg0: i32) -> (i32, i32) {
    %c0_i32 = arith.constant 0 : i32
    %c0_i32_0 = arith.constant 0 : i32
    %c0_i32_1 = arith.constant 0 : i32
    return %c0_i32, %c0_i32_0 : i32, i32
  }
  func.func @transform_3(%arg0: i32) -> (i32, i32) {
    %c0_i32 = arith.constant 0 : i32
    %c0_i32_0 = arith.constant 0 : i32
    %c0_i32_1 = arith.constant 0 : i32
    return %c0_i32, %c0_i32_0 : i32, i32
  }
  func.func @transform_4(%arg0: i32) -> (i32, i32) {
    %c0_i32 = arith.constant 0 : i32
    %c0_i32_0 = arith.constant 0 : i32
    %c0_i32_1 = arith.constant 0 : i32
    return %c0_i32, %c0_i32_0 : i32, i32
  }
  func.func @transform_5(%arg0: i32) -> (i32, i32) {
    %c0_i32 = arith.constant 0 : i32
    %c0_i32_0 = arith.constant 0 : i32
    %c0_i32_1 = arith.constant 0 : i32
    return %c0_i32, %c0_i32_0 : i32, i32
  }
  func.func @transform_6(%arg0: i32) -> (i32, i32) {
    %c0_i32 = arith.constant 0 : i32
    %c0_i32_0 = arith.constant 0 : i32
    return %arg0, %c0_i32 : i32, i32
  }
}

module attributes {stable_mosaic.version = 11 : i64} {
  func.func @_interaction_aggregation_kernel(%arg0: i32, %arg1: memref<128x32xf32, #tpu.memory_space<vmem>>, %arg2: memref<128x16xf32, #tpu.memory_space<vmem>>, %arg3: memref<32x192xf32, #tpu.memory_space<vmem>>, %arg4: memref<16x192xf32, #tpu.memory_space<vmem>>, %arg5: memref<64x128xf32, #tpu.memory_space<vmem>>, %arg6: memref<1x128xf32, #tpu.memory_space<vmem>>, %arg7: memref<128x128xf32, #tpu.memory_space<vmem>>) attributes {dimension_semantics = [#tpu.dimension_semantics<parallel>], iteration_bounds = array<i64: 2>, scalar_prefetch = 0 : i64, scratch_operands = 0 : i64, tpu.core_type = #tpu.core_type<tc>, window_params = [{transform_indices = @transform_0, window_bounds = array<i64: 128, 32>}, {transform_indices = @transform_1, window_bounds = array<i64: 128, 16>}, {pipeline_mode = #tpu.pipeline_mode<synchronous>, transform_indices = @transform_2, window_bounds = array<i64: 32, 192>}, {pipeline_mode = #tpu.pipeline_mode<synchronous>, transform_indices = @transform_3, window_bounds = array<i64: 16, 192>}, {pipeline_mode = #tpu.pipeline_mode<synchronous>, transform_indices = @transform_4, window_bounds = array<i64: 64, 128>}, {pipeline_mode = #tpu.pipeline_mode<synchronous>, transform_indices = @transform_5, window_bounds = array<i64: 1, 128>}, {transform_indices = @transform_6, window_bounds = array<i64: 128, 128>}]} {
    %c0 = arith.constant 0 : index
    %c0_0 = arith.constant 0 : index
    %0 = vector.load %arg1[%c0, %c0_0] : memref<128x32xf32, #tpu.memory_space<vmem>>, vector<128x32xf32>
    %c0_1 = arith.constant 0 : index
    %c0_2 = arith.constant 0 : index
    %1 = vector.load %arg3[%c0_1, %c0_2] : memref<32x192xf32, #tpu.memory_space<vmem>>, vector<32x192xf32>
    %cst = arith.constant dense<0.000000e+00> : vector<128x192xf32>
    %2 = tpu.matmul %0, %1, %cst {dimension_numbers = #tpu.dot_dimension_numbers<[1], [0], [0], [1], [0, 0, 1, 1], [], []>} : vector<128x32xf32>, vector<32x192xf32>, vector<128x192xf32> -> vector<128x192xf32>
    %c0_3 = arith.constant 0 : index
    %c0_4 = arith.constant 0 : index
    %3 = vector.load %arg2[%c0_3, %c0_4] : memref<128x16xf32, #tpu.memory_space<vmem>>, vector<128x16xf32>
    %c0_5 = arith.constant 0 : index
    %c0_6 = arith.constant 0 : index
    %4 = vector.load %arg4[%c0_5, %c0_6] : memref<16x192xf32, #tpu.memory_space<vmem>>, vector<16x192xf32>
    %cst_7 = arith.constant dense<0.000000e+00> : vector<128x192xf32>
    %5 = tpu.matmul %3, %4, %cst_7 {dimension_numbers = #tpu.dot_dimension_numbers<[1], [0], [0], [1], [0, 0, 1, 1], [], []>} : vector<128x16xf32>, vector<16x192xf32>, vector<128x192xf32> -> vector<128x192xf32>
    %6 = vector.extract_strided_slice %2 {offsets = [0, 0], sizes = [128, 128], strides = [1, 1]} : vector<128x192xf32> to vector<128x128xf32>
    %7 = vector.extract_strided_slice %5 {offsets = [0, 0], sizes = [128, 128], strides = [1, 1]} : vector<128x192xf32> to vector<128x128xf32>
    %8 = arith.addf %6, %7 : vector<128x128xf32>
    %9 = vector.extract_strided_slice %2 {offsets = [0, 128], sizes = [128, 64], strides = [1, 1]} : vector<128x192xf32> to vector<128x64xf32>
    %10 = vector.extract_strided_slice %5 {offsets = [0, 128], sizes = [128, 64], strides = [1, 1]} : vector<128x192xf32> to vector<128x64xf32>
    %11 = arith.mulf %9, %10 : vector<128x64xf32>
    %c0_8 = arith.constant 0 : index
    %c0_9 = arith.constant 0 : index
    %12 = vector.load %arg5[%c0_8, %c0_9] : memref<64x128xf32, #tpu.memory_space<vmem>>, vector<64x128xf32>
    %cst_10 = arith.constant dense<0.000000e+00> : vector<128x128xf32>
    %13 = tpu.matmul %11, %12, %cst_10 {dimension_numbers = #tpu.dot_dimension_numbers<[1], [0], [0], [1], [0, 0, 1, 1], [], []>} : vector<128x64xf32>, vector<64x128xf32>, vector<128x128xf32> -> vector<128x128xf32>
    %14 = arith.addf %13, %8 : vector<128x128xf32>
    %c0_11 = arith.constant 0 : index
    %c0_12 = arith.constant 0 : index
    %15 = vector.load %arg6[%c0_11, %c0_12] : memref<1x128xf32, #tpu.memory_space<vmem>>, vector<1x128xf32>
    %16 = vector.broadcast %15 : vector<1x128xf32> to vector<128x128xf32>
    %17 = arith.addf %14, %16 : vector<128x128xf32>
    %c0_13 = arith.constant 0 : index
    %c0_14 = arith.constant 0 : index
    %18 = vector.load %arg7[%c0_13, %c0_14] : memref<128x128xf32, #tpu.memory_space<vmem>>, vector<128x128xf32>
    tpu.vector_store %arg7[%c0_13, %c0_14], %17 {strides = array<i32>} : memref<128x128xf32, #tpu.memory_space<vmem>>, vector<128x128xf32>,
    return
  }
  func.func @transform_0(%arg0: i32) -> (i32, i32) {
    %c0_i32 = arith.constant 0 : i32
    %c0_i32_0 = arith.constant 0 : i32
    return %arg0, %c0_i32 : i32, i32
  }
  func.func @transform_1(%arg0: i32) -> (i32, i32) {
    %c0_i32 = arith.constant 0 : i32
    %c0_i32_0 = arith.constant 0 : i32
    return %arg0, %c0_i32 : i32, i32
  }
  func.func @transform_2(%arg0: i32) -> (i32, i32) {
    %c0_i32 = arith.constant 0 : i32
    %c0_i32_0 = arith.constant 0 : i32
    %c0_i32_1 = arith.constant 0 : i32
    return %c0_i32, %c0_i32_0 : i32, i32
  }
  func.func @transform_3(%arg0: i32) -> (i32, i32) {
    %c0_i32 = arith.constant 0 : i32
    %c0_i32_0 = arith.constant 0 : i32
    %c0_i32_1 = arith.constant 0 : i32
    return %c0_i32, %c0_i32_0 : i32, i32
  }
  func.func @transform_4(%arg0: i32) -> (i32, i32) {
    %c0_i32 = arith.constant 0 : i32
    %c0_i32_0 = arith.constant 0 : i32
    %c0_i32_1 = arith.constant 0 : i32
    return %c0_i32, %c0_i32_0 : i32, i32
  }
  func.func @transform_5(%arg0: i32) -> (i32, i32) {
    %c0_i32 = arith.constant 0 : i32
    %c0_i32_0 = arith.constant 0 : i32
    %c0_i32_1 = arith.constant 0 : i32
    return %c0_i32, %c0_i32_0 : i32, i32
  }
  func.func @transform_6(%arg0: i32) -> (i32, i32) {
    %c0_i32 = arith.constant 0 : i32
    %c0_i32_0 = arith.constant 0 : i32
    return %arg0, %c0_i32 : i32, i32
  }
}

</mosaic_0001>

<llo_original>
// kernel: tpu_custom_call.1
$region0: #{tpu_custom_call.1}
  #allocation0 [shape = 'u32[]', space=smem, size = 0x4, offset = 0x4, fixed_abs, tag = 'smem constant byte address 0x4 - core index']
  #allocation1 [shape = 'u32[144,128]{1,0:T(1,128)}', space=vmem, size = 0x12000, scoped, tag = 'internal scratch']
  %s0 = inlined_call_operand.vmem [shape: f32[256,32], index: 0, kind: input, shape index: {}]
  %s1 = inlined_call_operand.vmem [shape: f32[256,16], index: 1, kind: input, shape index: {}]
  %s2 = inlined_call_operand.vmem [shape: f32[32,192], index: 2, kind: input, shape index: {}]
  %s3 = inlined_call_operand.vmem [shape: f32[16,192], index: 3, kind: input, shape index: {}]
  %s4 = inlined_call_operand.vmem [shape: f32[64,128], index: 4, kind: input, shape index: {}]
  %s5 = inlined_call_operand.vmem [shape: f32[1,128], index: 5, kind: input, shape index: {}]
  %s6 = inlined_call_operand.hbm [shape: f32[256,128], index: 6, kind: output, shape index: {}]
  %s7 = sld [smem:[#allocation0]]
  $region57: #{tpu_custom_call.1} parent=0
    _
  %s9 = ssub.s32 1, %s7
  %s10 = scalar_select 0, %s9, %s7
  $region1: #{tpu_custom_call.1} parent=0
    #allocation2 [shape = 'u8[131072]{0}', space=vmem, size = 0x20000, scoped, tag = 'output window, operand 0']
    #allocation3 [shape = 's32[2]{0}', space=sflag, size = 0x8, scoped, tag = 'scoped memory for tpu_custom_call.1']
    %11 = vsyncpa [#allocation3], 0
    %s12 = scalar_lea.sflag [#allocation3], 1
    %13 = vsyncpa %s12, 0
    loop: start=0, step=1, limit=4
    $region2: #{tpu_custom_call.1} parent=1 // loop_pre_header
      _
    $region3: #{tpu_custom_call.1} parent=1 // loop_header
      %s15 = sphi 0, %s19
      %p16 = scmp.ge.s32.totalorder %s15, 4
      %s25 = sphi 0, %s27
      %s28 = sphi 0, %s25
      %s29 = sphi 0, %s28
      %s45 = sphi 0, %s29
      %s51 = sphi 0, %s53
      %s54 = sphi 0, %s51
      %s55 = sphi 0, %s54
      %s71 = sphi 0, %s55
      %s75 = sphi 0, %s75
      %s77 = sphi 0, %s75
      %s78 = sphi 0, %s77
      %s92 = sphi 0, %s78
      %s96 = sphi 0, %s96
      %s98 = sphi 0, %s96
      %s99 = sphi 0, %s98
      %s113 = sphi 0, %s99
      %s117 = sphi 0, %s117
      %s119 = sphi 0, %s117
      %s120 = sphi 0, %s119
      %s134 = sphi 0, %s120
      %s138 = sphi 0, %s138
      %s140 = sphi 0, %s138
      %s141 = sphi 0, %s140
      %s155 = sphi 0, %s141
      %s161 = sphi 0, %s163
      %s164 = sphi 0, %s161
      %s165 = sphi 0, %s164
      %s181 = sphi 0, %s165
    $region4: #{tpu_custom_call.1} parent=1 // loop_header_branch
      %18 = sbr.rel (%p16) target = $region8
    $region5: #{tpu_custom_call.1} parent=1 // loop_body
      %s20 = ssub.s32 %s15, 1
      %s21 = ssub.s32 %s15, 2
      %s22 = sadd.s32 %s15, 1
      %s23 = ssub.s32 %s15, %s22
      %p24 = scmp.eq.s32.totalorder %s23, 0
      %s26 = sadd.s32 %s25, 1
      %s27 = scalar_select %p24, %s25, %s26
      %p30 = pneg %p24
      %p31 = scmp.eq.s32.totalorder %s15, 1
      %p32 = por %p30, %p31
      %p33 = scmp.ne.s32.totalorder %s25, %s28
      %p34 = scmp.eq.s32.totalorder %s15, 0
      %p35 = por %p33, %p34
      %p36 = scmp.ne.s32.totalorder %s25, %s28
      %p37 = scmp.eq.s32.totalorder %s20, 1
      %p38 = por %p36, %p37
      %p39 = scmp.ne.s32.totalorder %s28, %s29
      %p40 = scmp.eq.s32.totalorder %s20, 0
      %p41 = por %p39, %p40
      %p42 = scmp.ne.s32.totalorder %s28, %s29
      %p43 = scmp.eq.s32.totalorder %s21, 1
      %p44 = por %p42, %p43
      %p46 = scmp.ne.s32.totalorder %s29, %s45
      %p47 = scmp.eq.s32.totalorder %s21, 0
      %p48 = por %p46, %p47
      %s49 = ssub.s32 %s15, %s22
      %p50 = scmp.eq.s32.totalorder %s49, 0
      %s52 = sadd.s32 %s51, 1
      %s53 = scalar_select %p50, %s51, %s52
      %p56 = pneg %p50
      %p57 = scmp.eq.s32.totalorder %s15, 1
      %p58 = por %p56, %p57
      %p59 = scmp.ne.s32.totalorder %s51, %s54
      %p60 = scmp.eq.s32.totalorder %s15, 0
      %p61 = por %p59, %p60
      %p62 = scmp.ne.s32.totalorder %s51, %s54
      %p63 = scmp.eq.s32.totalorder %s20, 1
      %p64 = por %p62, %p63
      %p65 = scmp.ne.s32.totalorder %s54, %s55
      %p66 = scmp.eq.s32.totalorder %s20, 0
      %p67 = por %p65, %p66
      %p68 = scmp.ne.s32.totalorder %s54, %s55
      %p69 = scmp.eq.s32.totalorder %s21, 1
      %p70 = por %p68, %p69
      %p72 = scmp.ne.s32.totalorder %s55, %s71
      %p73 = scmp.eq.s32.totalorder %s21, 0
      %p74 = por %p72, %p73
      %s76 = sadd.s32 %s75, 1
      %p79 = scmp.eq.s32.totalorder %s15, 1
      %p80 = scmp.ne.s32.totalorder %s75, %s77
      %p81 = scmp.eq.s32.totalorder %s15, 0
      %p82 = por %p80, %p81
      %p83 = scmp.ne.s32.totalorder %s75, %s77
      %p84 = scmp.eq.s32.totalorder %s20, 1
      %p85 = por %p83, %p84
      %p86 = scmp.ne.s32.totalorder %s77, %s78
      %p87 = scmp.eq.s32.totalorder %s20, 0
      %p88 = por %p86, %p87
      %p89 = scmp.ne.s32.totalorder %s77, %s78
      %p90 = scmp.eq.s32.totalorder %s21, 1
      %p91 = por %p89, %p90
      %p93 = scmp.ne.s32.totalorder %s78, %s92
      %p94 = scmp.eq.s32.totalorder %s21, 0
      %p95 = por %p93, %p94
      %s97 = sadd.s32 %s96, 1
      %p100 = scmp.eq.s32.totalorder %s15, 1
      %p101 = scmp.ne.s32.totalorder %s96, %s98
      %p102 = scmp.eq.s32.totalorder %s15, 0
      %p103 = por %p101, %p102
      %p104 = scmp.ne.s32.totalorder %s96, %s98
      %p105 = scmp.eq.s32.totalorder %s20, 1
      %p106 = por %p104, %p105
      %p107 = scmp.ne.s32.totalorder %s98, %s99
      %p108 = scmp.eq.s32.totalorder %s20, 0
      %p109 = por %p107, %p108
      %p110 = scmp.ne.s32.totalorder %s98, %s99
      %p111 = scmp.eq.s32.totalorder %s21, 1
      %p112 = por %p110, %p111
      %p114 = scmp.ne.s32.totalorder %s99, %s113
      %p115 = scmp.eq.s32.totalorder %s21, 0
      %p116 = por %p114, %p115
      %s118 = sadd.s32 %s117, 1
      %p121 = scmp.eq.s32.totalorder %s15, 1
      %p122 = scmp.ne.s32.totalorder %s117, %s119
      %p123 = scmp.eq.s32.totalorder %s15, 0
      %p124 = por %p122, %p123
      %p125 = scmp.ne.s32.totalorder %s117, %s119
      %p126 = scmp.eq.s32.totalorder %s20, 1
      %p127 = por %p125, %p126
      %p128 = scmp.ne.s32.totalorder %s119, %s120
      %p129 = scmp.eq.s32.totalorder %s20, 0
      %p130 = por %p128, %p129
      %p131 = scmp.ne.s32.totalorder %s119, %s120
      %p132 = scmp.eq.s32.totalorder %s21, 1
      %p133 = por %p131, %p132
      %p135 = scmp.ne.s32.totalorder %s120, %s134
      %p136 = scmp.eq.s32.totalorder %s21, 0
      %p137 = por %p135, %p136
      %s139 = sadd.s32 %s138, 1
      %p142 = scmp.eq.s32.totalorder %s15, 1
      %p143 = scmp.ne.s32.totalorder %s138, %s140
      %p144 = scmp.eq.s32.totalorder %s15, 0
      %p145 = por %p143, %p144
      %p146 = scmp.ne.s32.totalorder %s138, %s140
      %p147 = scmp.eq.s32.totalorder %s20, 1
      %p148 = por %p146, %p147
      %p149 = scmp.ne.s32.totalorder %s140, %s141
      %p150 = scmp.eq.s32.totalorder %s20, 0
      %p151 = por %p149, %p150
      %p152 = scmp.ne.s32.totalorder %s140, %s141
      %p153 = scmp.eq.s32.totalorder %s21, 1
      %p154 = por %p152, %p153
      %p156 = scmp.ne.s32.totalorder %s141, %s155
      %p157 = scmp.eq.s32.totalorder %s21, 0
      %p158 = por %p156, %p157
      %s159 = ssub.s32 %s15, %s22
      %p160 = scmp.eq.s32.totalorder %s159, 0
      %s162 = sadd.s32 %s161, 1
      %s163 = scalar_select %p160, %s161, %s162
      %p166 = pneg %p160
      %p167 = scmp.eq.s32.totalorder %s15, 1
      %p168 = por %p166, %p167
      %p169 = scmp.ne.s32.totalorder %s161, %s164
      %p170 = scmp.eq.s32.totalorder %s15, 0
      %p171 = por %p169, %p170
      %p172 = scmp.ne.s32.totalorder %s161, %s164
      %p173 = scmp.eq.s32.totalorder %s20, 1
      %p174 = por %p172, %p173
      %p175 = scmp.ne.s32.totalorder %s164, %s165
      %p176 = scmp.eq.s32.totalorder %s20, 0
      %p177 = por %p175, %p176
      %p178 = scmp.ne.s32.totalorder %s164, %s165
      %p179 = scmp.eq.s32.totalorder %s21, 1
      %p180 = por %p178, %p179
      %p182 = scmp.ne.s32.totalorder %s165, %s181
      %p183 = scmp.eq.s32.totalorder %s21, 0
      %p184 = por %p182, %p183
      %p185 = scmp.le.s32.totalorder 1, %s15
      %p186 = scmp.lt.s32.totalorder %s15, 3
      %p187 = pnand %p185, %p186
      %p188 = pneg %p187
      // Predicated region
      $region9: #{tpu_custom_call.1} parent=5 // pred_check
        _
      $region10: #{tpu_custom_call.1} parent=5 // pred_check_branch
        %190 = sbr.rel (%p187) target = $region12
      $region11: #{tpu_custom_call.1} parent=5 // pred_region
        %s191 = ssub.s32 %s15, 1
        // Predicated region
        $region13: #{tpu_custom_call.1} parent=11 // pred_check
          %p192 = pneg %p88
        $region14: #{tpu_custom_call.1} parent=11 // pred_check_branch
          %194 = sbr.rel (%p192) target = $region16
        $region15: #{tpu_custom_call.1} parent=11 // pred_region
          _
        $region16: #{tpu_custom_call.1} parent=11 // pred_fallthru
          _
        // Predicated region
        $region17: #{tpu_custom_call.1} parent=11 // pred_check
          %p195 = pneg %p109
        $region18: #{tpu_custom_call.1} parent=11 // pred_check_branch
          %197 = sbr.rel (%p195) target = $region20
        $region19: #{tpu_custom_call.1} parent=11 // pred_region
          _
        $region20: #{tpu_custom_call.1} parent=11 // pred_fallthru
          _
        // Predicated region
        $region21: #{tpu_custom_call.1} parent=11 // pred_check
          %p198 = pneg %p130
        $region22: #{tpu_custom_call.1} parent=11 // pred_check_branch
          %200 = sbr.rel (%p198) target = $region24
        $region23: #{tpu_custom_call.1} parent=11 // pred_region
          _
        $region24: #{tpu_custom_call.1} parent=11 // pred_fallthru
          _
        // Predicated region
        $region25: #{tpu_custom_call.1} parent=11 // pred_check
          %p201 = pneg %p151
        $region26: #{tpu_custom_call.1} parent=11 // pred_check_branch
          %203 = sbr.rel (%p201) target = $region28
        $region27: #{tpu_custom_call.1} parent=11 // pred_region
          _
        $region28: #{tpu_custom_call.1} parent=11 // pred_fallthru
          _
      $region12: #{tpu_custom_call.1} parent=5 // pred_fallthru
        _
      %p204 = scmp.lt.s32.totalorder %s15, 2
      // Predicated region
      $region29: #{tpu_custom_call.1} parent=5 // pred_check
        %p205 = pneg %p204
      $region30: #{tpu_custom_call.1} parent=5 // pred_check_branch
        %207 = sbr.rel (%p205) target = $region32
      $region31: #{tpu_custom_call.1} parent=5 // pred_region
        // Predicated region
        $region33: #{tpu_custom_call.1} parent=31 // pred_check
          %p208 = pneg %p35
        $region34: #{tpu_custom_call.1} parent=31 // pred_check_branch
          %210 = sbr.rel (%p208) target = $region36
        $region35: #{tpu_custom_call.1} parent=31 // pred_region
          %s211 = smul.u32 16, %s15
          %p212 = scmp.lt.s32.totalorder %s211, 31
          %s213 = scalar_select %p212, %s211, 31
          %s214 = smul.addr %s213, 8
          %s215 = scalar_lea.vmem %s0, %s214
          %s216 = smul.u32 16, %s15
        $region36: #{tpu_custom_call.1} parent=31 // pred_fallthru
          _
        // Predicated region
        $region37: #{tpu_custom_call.1} parent=31 // pred_check
          %p217 = pneg %p61
        $region38: #{tpu_custom_call.1} parent=31 // pred_check_branch
          %219 = sbr.rel (%p217) target = $region40
        $region39: #{tpu_custom_call.1} parent=31 // pred_region
          %s220 = smul.u32 16, %s15
          %p221 = scmp.lt.s32.totalorder %s220, 31
          %s222 = scalar_select %p221, %s220, 31
          %s223 = smul.addr %s222, 8
          %s224 = scalar_lea.vmem %s1, %s223
          %s225 = smul.u32 16, %s15
        $region40: #{tpu_custom_call.1} parent=31 // pred_fallthru
          _
      $region32: #{tpu_custom_call.1} parent=5 // pred_fallthru
        _
      %p226 = scmp.le.s32.totalorder 1, %s15
      %p227 = scmp.lt.s32.totalorder %s15, 3
      %p228 = pnand %p226, %p227
      %p229 = pneg %p228
      // Predicated region
      $region41: #{tpu_custom_call.1} parent=5 // pred_check
        _
      $region42: #{tpu_custom_call.1} parent=5 // pred_check_branch
        %231 = sbr.rel (%p228) target = $region44
      $region43: #{tpu_custom_call.1} parent=5 // pred_region
        %s232 = ssub.s32 %s15, 1
        %s233 = smul.u32 16, %s20
        %p234 = scmp.lt.s32.totalorder %s233, 31
        %s235 = scalar_select %p234, %s233, 31
        %s236 = smul.addr %s235, 8
        %s237 = scalar_lea.vmem %s0, %s236
        %p238 = pneg %p41
        %p239 = pneg %p38
        %s240 = smul.u32 16, %s20
        %p241 = scmp.lt.s32.totalorder %s240, 31
        %s242 = scalar_select %p241, %s240, 31
        %s243 = smul.addr %s242, 8
        %s244 = scalar_lea.vmem %s1, %s243
        %p245 = pneg %p67
        %p246 = pneg %p64
        %p247 = pneg %p88
        %p248 = pneg %p85
        %p249 = pneg %p109
        %p250 = pneg %p106
        %p251 = pneg %p130
        %p252 = pneg %p127
        %p253 = pneg %p151
        %p254 = pneg %p148
        %p255 = pneg %p177
        %p256 = pneg %p174
        %s257 = sand.u32 %s164, 1
        %s258 = scalar_lea.sflag [#allocation3], %s257
        %s259 = sand.u32 %s164, 1
        %s260 = smul.addr %s259, 128
        %s261 = scalar_lea.vmem [#allocation2], %s260
        %s262 = smul.u32 16, %s20
        %p263 = scmp.lt.s32.totalorder %s262, 31
        %s264 = scalar_select %p263, %s262, 31
        %s265 = smul.addr %s264, 8
        %s266 = scalar_lea.vmem %s0, %s265
        %s267 = smul.u32 16, %s20
        %s268 = smul.u32 16, %s20
        %p269 = scmp.lt.s32.totalorder %s268, 31
        %s270 = scalar_select %p269, %s268, 31
        %s271 = smul.addr %s270, 8
        %s272 = scalar_lea.vmem %s1, %s271
        %s273 = smul.u32 16, %s20
        %s274 = smul.u32 16, %s20
        %v275 = vld [vmem:[%s266] sm:$0xff]
        %v276 = vld [vmem:[%s266 + $0x8] sm:$0xff]
        %v277 = vld [vmem:[%s266 + $0x10] sm:$0xff]
        %v278 = vld [vmem:[%s266 + $0x18] sm:$0xff]
        %v279 = vld [vmem:[%s266 + $0x20] sm:$0xff]
        %v280 = vld [vmem:[%s266 + $0x28] sm:$0xff]
        %v281 = vld [vmem:[%s266 + $0x30] sm:$0xff]
        %v282 = vld [vmem:[%s266 + $0x38] sm:$0xff]
        %v283 = vld [vmem:[%s266 + $0x40] sm:$0xff]
        %v284 = vld [vmem:[%s266 + $0x48] sm:$0xff]
        %v285 = vld [vmem:[%s266 + $0x50] sm:$0xff]
        %v286 = vld [vmem:[%s266 + $0x58] sm:$0xff]
        %v287 = vld [vmem:[%s266 + $0x60] sm:$0xff]
        %v288 = vld [vmem:[%s266 + $0x68] sm:$0xff]
        %v289 = vld [vmem:[%s266 + $0x70] sm:$0xff]
        %v290 = vld [vmem:[%s266 + $0x78] sm:$0xff]
        %v291 = vld [vmem:[%s2] sm:$0xff]
        %v292 = vld [vmem:[%s2 + $0x8] sm:$0xff]
        %v293 = vld [vmem:[%s2 + $0x10] sm:$0xff]
        %v294 = vld [vmem:[%s2 + $0x18] sm:$0xff]
        %v295 = vld [vmem:[%s2 + $0x20] sm:$0xff]
        %v296 = vld [vmem:[%s2 + $0x28] sm:$0xff]
        %v297 = vld [vmem:[%s2 + $0x30] sm:$0xff]
        %v298 = vld [vmem:[%s2 + $0x38] sm:$0xff]
        %vm299 = vcmask 261120
        %v301 = vsel %vm299, %v275, 0
        %v304 = vsel %vm299, %v276, 0
        %v307 = vsel %vm299, %v277, 0
        %v310 = vsel %vm299, %v278, 0
        %v313 = vsel %vm299, %v279, 0
        %v316 = vsel %vm299, %v280, 0
        %v319 = vsel %vm299, %v281, 0
        %v322 = vsel %vm299, %v282, 0
        %v325 = vsel %vm299, %v283, 0
        %v328 = vsel %vm299, %v284, 0
        %v331 = vsel %vm299, %v285, 0
        %v334 = vsel %vm299, %v286, 0
        %v337 = vsel %vm299, %v287, 0
        %v340 = vsel %vm299, %v288, 0
        %v343 = vsel %vm299, %v289, 0
        %v346 = vsel %vm299, %v290, 0
        %348 = vmatprep.subr.mxu0 %v292
        %349 = vmatpush1.msra.mxu0 %v291
        %350 = vmatprep.subr.mxu0 %v294
        %351 = vmatpush1.msra.mxu0 %v293
        %352 = vmatprep.subr.mxu0 %v296
        %353 = vmatpush1.msra.mxu0 %v295
        %354 = vmatprep.subr.mxu0 %v298
        %355 = vmatpush1.msra.mxu0 %v297
        %356 = vmatprep.subr.mxu0 0.0
        %357 = vmatpush1.msra.mxu0 0.0
        %358 = vmatprep.subr.mxu0 0.0
        %359 = vmatpush1.msra.mxu0 0.0
        %360 = vmatprep.subr.mxu0 0.0
        %361 = vmatpush1.msra.mxu0 0.0
        %362 = vmatprep.subr.mxu0 0.0
        %363 = vmatpush1.msra.mxu0 0.0
        %364 = vmatprep.subr.mxu0 0.0
        %365 = vmatpush1.msra.mxu0 0.0
        %366 = vmatprep.subr.mxu0 0.0
        %367 = vmatpush1.msra.mxu0 0.0
        %368 = vmatprep.subr.mxu0 0.0
        %369 = vmatpush1.msra.mxu0 0.0
        %370 = vmatprep.subr.mxu0 0.0
        %371 = vmatpush1.msra.mxu0 0.0
        %372 = vmatprep.subr.mxu0 0.0
        %373 = vmatpush1.msra.mxu0 0.0
        %374 = vmatprep.subr.mxu0 0.0
        %375 = vmatpush1.msra.mxu0 0.0
        %376 = vmatprep.subr.mxu0 0.0
        %377 = vmatpush1.msra.mxu0 0.0
        %378 = vmatprep.subr.mxu0 0.0
        %379 = vmatpush1.msra.mxu0 0.0
        %380 = vmatprep.subr.mxu0 0.0
        %381 = vmatpush1.msra.mxu0 0.0
        %382 = vmatprep.subr.mxu0 0.0
        %383 = vmatpush1.msra.mxu0 0.0
        %384 = vmatprep.subr.mxu0 0.0
        %385 = vmatpush1.msra.mxu0 0.0
        %386 = vmatprep.subr.mxu0 0.0
        %387 = vmatpush1.msra.mxu0 0.0
        %388 = vmatprep.subr.mxu0 0.0
        %389 = vmatpush1.msra.mxu0 0.0
        %390 = vmatprep.subr.mxu0 0.0
        %391 = vmatpush1.msra.mxu0 0.0
        %392 = vmatprep.subr.mxu0 0.0
        %393 = vmatpush1.msra.mxu0 0.0
        %394 = vmatprep.subr.mxu0 0.0
        %395 = vmatpush1.msra.mxu0 0.0
        %396 = vmatprep.subr.mxu0 0.0
        %397 = vmatpush1.msra.mxu0 0.0
        %398 = vmatprep.subr.mxu0 0.0
        %399 = vmatpush1.msra.mxu0 0.0
        %400 = vmatprep.subr.mxu0 0.0
        %401 = vmatpush1.msra.mxu0 0.0
        %402 = vmatprep.subr.mxu0 0.0
        %403 = vmatpush1.msra.mxu0 0.0
        %404 = vmatprep.subr.mxu0 0.0
        %405 = vmatpush1.msra.mxu0 0.0
        %406 = vmatprep.subr.mxu0 0.0
        %407 = vmatpush1.msra.mxu0 0.0
        %408 = vmatprep.subr.mxu0 0.0
        %409 = vmatpush1.msra.mxu0 0.0
        %410 = vmatprep.subr.mxu0 0.0
        %411 = vmatpush1.msra.mxu0 0.0
        %412 = vmatprep.mubr.f32.mxu0 0.0
        %413 = vmatmul.mubr.f32.gmra.mrb[0].mxu0 %v301
        %v414 = vpop.f32.mrb[0].mxu0
        %v415 = vadd.f32 0.0, %v414
        %v416 = vpop.f32.mrb[0].mxu0
        %v417 = vadd.f32 0.0, %v416
        %418 = vmatprep.mubr.f32.mxu0 0.0
        %419 = vmatmul.mubr.f32.gmra.mrb[0].mxu0 %v304
        %v420 = vpop.f32.mrb[0].mxu0
        %v421 = vadd.f32 0.0, %v420
        %v422 = vpop.f32.mrb[0].mxu0
        %v423 = vadd.f32 0.0, %v422
        %424 = vmatprep.mubr.f32.mxu0 0.0
        %425 = vmatmul.mubr.f32.gmra.mrb[0].mxu0 %v307
        %v426 = vpop.f32.mrb[0].mxu0
        %v427 = vadd.f32 0.0, %v426
        %v428 = vpop.f32.mrb[0].mxu0
        %v429 = vadd.f32 0.0, %v428
        %430 = vmatprep.mubr.f32.mxu0 0.0
        %431 = vmatmul.mubr.f32.gmra.mrb[0].mxu0 %v310
        %v432 = vpop.f32.mrb[0].mxu0
        %v433 = vadd.f32 0.0, %v432
        %v434 = vpop.f32.mrb[0].mxu0
        %v435 = vadd.f32 0.0, %v434
        %436 = vmatprep.mubr.f32.mxu0 0.0
        %437 = vmatmul.mubr.f32.gmra.mrb[0].mxu0 %v313
        %v438 = vpop.f32.mrb[0].mxu0
        %v439 = vadd.f32 0.0, %v438
        %v440 = vpop.f32.mrb[0].mxu0
        %v441 = vadd.f32 0.0, %v440
        %442 = vmatprep.mubr.f32.mxu0 0.0
        %443 = vmatmul.mubr.f32.gmra.mrb[0].mxu0 %v316
        %v444 = vpop.f32.mrb[0].mxu0
        %v445 = vadd.f32 0.0, %v444
        %v446 = vpop.f32.mrb[0].mxu0
        %v447 = vadd.f32 0.0, %v446
        %448 = vmatprep.mubr.f32.mxu0 0.0
        %449 = vmatmul.mubr.f32.gmra.mrb[0].mxu0 %v319
        %v450 = vpop.f32.mrb[0].mxu0
        %v451 = vadd.f32 0.0, %v450
        %v452 = vpop.f32.mrb[0].mxu0
        %v453 = vadd.f32 0.0, %v452
        %454 = vmatprep.mubr.f32.mxu0 0.0
        %455 = vmatmul.mubr.f32.gmra.mrb[0].mxu0 %v322
        %v456 = vpop.f32.mrb[0].mxu0
        %v457 = vadd.f32 0.0, %v456
        %v458 = vpop.f32.mrb[0].mxu0
        %v459 = vadd.f32 0.0, %v458
        %460 = vmatprep.mubr.f32.mxu0 0.0
        %461 = vmatmul.mubr.f32.gmra.mrb[0].mxu0 %v325
        %v462 = vpop.f32.mrb[0].mxu0
        %v463 = vadd.f32 0.0, %v462
        %v464 = vpop.f32.mrb[0].mxu0
        %v465 = vadd.f32 0.0, %v464
        %466 = vmatprep.mubr.f32.mxu0 0.0
        %467 = vmatmul.mubr.f32.gmra.mrb[0].mxu0 %v328
        %v468 = vpop.f32.mrb[0].mxu0
        %v469 = vadd.f32 0.0, %v468
        %v470 = vpop.f32.mrb[0].mxu0
        %v471 = vadd.f32 0.0, %v470
        %472 = vmatprep.mubr.f32.mxu0 0.0
        %473 = vmatmul.mubr.f32.gmra.mrb[0].mxu0 %v331
        %v474 = vpop.f32.mrb[0].mxu0
        %v475 = vadd.f32 0.0, %v474
        %v476 = vpop.f32.mrb[0].mxu0
        %v477 = vadd.f32 0.0, %v476
        %478 = vmatprep.mubr.f32.mxu0 0.0
        %479 = vmatmul.mubr.f32.gmra.mrb[0].mxu0 %v334
        %v480 = vpop.f32.mrb[0].mxu0
        %v481 = vadd.f32 0.0, %v480
        %v482 = vpop.f32.mrb[0].mxu0
        %v483 = vadd.f32 0.0, %v482
        %484 = vmatprep.mubr.f32.mxu0 0.0
        %485 = vmatmul.mubr.f32.gmra.mrb[0].mxu0 %v337
        %v486 = vpop.f32.mrb[0].mxu0
        %v487 = vadd.f32 0.0, %v486
        %v488 = vpop.f32.mrb[0].mxu0
        %v489 = vadd.f32 0.0, %v488
        %490 = vmatprep.mubr.f32.mxu0 0.0
        %491 = vmatmul.mubr.f32.gmra.mrb[0].mxu0 %v340
        %v492 = vpop.f32.mrb[0].mxu0
        %v493 = vadd.f32 0.0, %v492
        %v494 = vpop.f32.mrb[0].mxu0
        %v495 = vadd.f32 0.0, %v494
        %496 = vmatprep.mubr.f32.mxu0 0.0
        %497 = vmatmul.mubr.f32.gmra.mrb[0].mxu0 %v343
        %v498 = vpop.f32.mrb[0].mxu0
        %v499 = vadd.f32 0.0, %v498
        %v500 = vpop.f32.mrb[0].mxu0
        %v501 = vadd.f32 0.0, %v500
        %502 = vmatprep.mubr.f32.mxu0 0.0
        %503 = vmatmul.mubr.f32.gmra.mrb[0].mxu0 %v346
        %v504 = vpop.f32.mrb[0].mxu0
        %v505 = vadd.f32 0.0, %v504
        %v506 = vpop.f32.mrb[0].mxu0
        %v507 = vadd.f32 0.0, %v506
        %508 = vdwg.mxu0
        %v509 = vld [vmem:[%s272] sm:$0xff]
        %v510 = vld [vmem:[%s272 + $0x8] sm:$0xff]
        %v511 = vld [vmem:[%s272 + $0x10] sm:$0xff]
        %v512 = vld [vmem:[%s272 + $0x18] sm:$0xff]
        %v513 = vld [vmem:[%s272 + $0x20] sm:$0xff]
        %v514 = vld [vmem:[%s272 + $0x28] sm:$0xff]
        %v515 = vld [vmem:[%s272 + $0x30] sm:$0xff]
        %v516 = vld [vmem:[%s272 + $0x38] sm:$0xff]
        %v517 = vld [vmem:[%s272 + $0x40] sm:$0xff]
        %v518 = vld [vmem:[%s272 + $0x48] sm:$0xff]
        %v519 = vld [vmem:[%s272 + $0x50] sm:$0xff]
        %v520 = vld [vmem:[%s272 + $0x58] sm:$0xff]
        %v521 = vld [vmem:[%s272 + $0x60] sm:$0xff]
        %v522 = vld [vmem:[%s272 + $0x68] sm:$0xff]
        %v523 = vld [vmem:[%s272 + $0x70] sm:$0xff]
        %v524 = vld [vmem:[%s272 + $0x78] sm:$0xff]
        %v525 = vld [vmem:[%s3] sm:$0xff]
        %v526 = vld [vmem:[%s3 + $0x8] sm:$0xff]
        %v527 = vld [vmem:[%s3 + $0x10] sm:$0xff]
        %v528 = vld [vmem:[%s3 + $0x18] sm:$0xff]
        %vm529 = vcmask 130048
        %v531 = vsel %vm529, %v509, 0
        %v534 = vsel %vm529, %v510, 0
        %v537 = vsel %vm529, %v511, 0
        %v540 = vsel %vm529, %v512, 0
        %v543 = vsel %vm529, %v513, 0
        %v546 = vsel %vm529, %v514, 0
        %v549 = vsel %vm529, %v515, 0
        %v552 = vsel %vm529, %v516, 0
        %v555 = vsel %vm529, %v517, 0
        %v558 = vsel %vm529, %v518, 0
        %v561 = vsel %vm529, %v519, 0
        %v564 = vsel %vm529, %v520, 0
        %v567 = vsel %vm529, %v521, 0
        %v570 = vsel %vm529, %v522, 0
        %v573 = vsel %vm529, %v523, 0
        %v576 = vsel %vm529, %v524, 0
        %578 = vmatprep.subr.mxu0 %v526
        %579 = vmatpush1.msra.mxu0 %v525
        %580 = vmatprep.subr.mxu0 %v528
        %581 = vmatpush1.msra.mxu0 %v527
        %582 = vmatprep.subr.mxu0 0.0
        %583 = vmatpush1.msra.mxu0 0.0
        %584 = vmatprep.subr.mxu0 0.0
        %585 = vmatpush1.msra.mxu0 0.0
        %586 = vmatprep.subr.mxu0 0.0
        %587 = vmatpush1.msra.mxu0 0.0
        %588 = vmatprep.subr.mxu0 0.0
        %589 = vmatpush1.msra.mxu0 0.0
        %590 = vmatprep.subr.mxu0 0.0
        %591 = vmatpush1.msra.mxu0 0.0
        %592 = vmatprep.subr.mxu0 0.0
        %593 = vmatpush1.msra.mxu0 0.0
        %594 = vmatprep.subr.mxu0 0.0
        %595 = vmatpush1.msra.mxu0 0.0
        %596 = vmatprep.subr.mxu0 0.0
        %597 = vmatpush1.msra.mxu0 0.0
        %598 = vmatprep.subr.mxu0 0.0
        %599 = vmatpush1.msra.mxu0 0.0
        %600 = vmatprep.subr.mxu0 0.0
        %601 = vmatpush1.msra.mxu0 0.0
        %602 = vmatprep.subr.mxu0 0.0
        %603 = vmatpush1.msra.mxu0 0.0
        %604 = vmatprep.subr.mxu0 0.0
        %605 = vmatpush1.msra.mxu0 0.0
        %606 = vmatprep.subr.mxu0 0.0
        %607 = vmatpush1.msra.mxu0 0.0
        %608 = vmatprep.subr.mxu0 0.0
        %609 = vmatpush1.msra.mxu0 0.0
        %610 = vmatprep.subr.mxu0 0.0
        %611 = vmatpush1.msra.mxu0 0.0
        %612 = vmatprep.subr.mxu0 0.0
        %613 = vmatpush1.msra.mxu0 0.0
        %614 = vmatprep.subr.mxu0 0.0
        %615 = vmatpush1.msra.mxu0 0.0
        %616 = vmatprep.subr.mxu0 0.0
        %617 = vmatpush1.msra.mxu0 0.0
        %618 = vmatprep.subr.mxu0 0.0
        %619 = vmatpush1.msra.mxu0 0.0
        %620 = vmatprep.subr.mxu0 0.0
        %621 = vmatpush1.msra.mxu0 0.0
        %622 = vmatprep.subr.mxu0 0.0
        %623 = vmatpush1.msra.mxu0 0.0
        %624 = vmatprep.subr.mxu0 0.0
        %625 = vmatpush1.msra.mxu0 0.0
        %626 = vmatprep.subr.mxu0 0.0
        %627 = vmatpush1.msra.mxu0 0.0
        %628 = vmatprep.subr.mxu0 0.0
        %629 = vmatpush1.msra.mxu0 0.0
        %630 = vmatprep.subr.mxu0 0.0
        %631 = vmatpush1.msra.mxu0 0.0
        %632 = vmatprep.subr.mxu0 0.0
        %633 = vmatpush1.msra.mxu0 0.0
        %634 = vmatprep.subr.mxu0 0.0
        %635 = vmatpush1.msra.mxu0 0.0
        %636 = vmatprep.subr.mxu0 0.0
        %637 = vmatpush1.msra.mxu0 0.0
        %638 = vmatprep.subr.mxu0 0.0
        %639 = vmatpush1.msra.mxu0 0.0
        %640 = vmatprep.subr.mxu0 0.0
        %641 = vmatpush1.msra.mxu0 0.0
        %642 = vmatprep.mubr.f32.mxu0 0.0
        %643 = vmatmul.mubr.f32.gmra.mrb[0].mxu0 %v531
        %v644 = vpop.f32.mrb[0].mxu0
        %v645 = vadd.f32 0.0, %v644
        %v646 = vpop.f32.mrb[0].mxu0
        %v647 = vadd.f32 0.0, %v646
        %648 = vmatprep.mubr.f32.mxu0 0.0
        %649 = vmatmul.mubr.f32.gmra.mrb[0].mxu0 %v534
        %v650 = vpop.f32.mrb[0].mxu0
        %v651 = vadd.f32 0.0, %v650
        %v652 = vpop.f32.mrb[0].mxu0
        %v653 = vadd.f32 0.0, %v652
        %654 = vmatprep.mubr.f32.mxu0 0.0
        %655 = vmatmul.mubr.f32.gmra.mrb[0].mxu0 %v537
        %v656 = vpop.f32.mrb[0].mxu0
        %v657 = vadd.f32 0.0, %v656
        %v658 = vpop.f32.mrb[0].mxu0
        %v659 = vadd.f32 0.0, %v658
        %660 = vmatprep.mubr.f32.mxu0 0.0
        %661 = vmatmul.mubr.f32.gmra.mrb[0].mxu0 %v540
        %v662 = vpop.f32.mrb[0].mxu0
        %v663 = vadd.f32 0.0, %v662
        %v664 = vpop.f32.mrb[0].mxu0
        %v665 = vadd.f32 0.0, %v664
        %666 = vmatprep.mubr.f32.mxu0 0.0
        %667 = vmatmul.mubr.f32.gmra.mrb[0].mxu0 %v543
        %v668 = vpop.f32.mrb[0].mxu0
        %v669 = vadd.f32 0.0, %v668
        %v670 = vpop.f32.mrb[0].mxu0
        %v671 = vadd.f32 0.0, %v670
        %672 = vmatprep.mubr.f32.mxu0 0.0
        %673 = vmatmul.mubr.f32.gmra.mrb[0].mxu0 %v546
        %v674 = vpop.f32.mrb[0].mxu0
        %v675 = vadd.f32 0.0, %v674
        %v676 = vpop.f32.mrb[0].mxu0
        %v677 = vadd.f32 0.0, %v676
        %678 = vmatprep.mubr.f32.mxu0 0.0
        %679 = vmatmul.mubr.f32.gmra.mrb[0].mxu0 %v549
        %v680 = vpop.f32.mrb[0].mxu0
        %v681 = vadd.f32 0.0, %v680
        %v682 = vpop.f32.mrb[0].mxu0
        %v683 = vadd.f32 0.0, %v682
        %684 = vmatprep.mubr.f32.mxu0 0.0
        %685 = vmatmul.mubr.f32.gmra.mrb[0].mxu0 %v552
        %v686 = vpop.f32.mrb[0].mxu0
        %v687 = vadd.f32 0.0, %v686
        %v688 = vpop.f32.mrb[0].mxu0
        %v689 = vadd.f32 0.0, %v688
        %690 = vmatprep.mubr.f32.mxu0 0.0
        %691 = vmatmul.mubr.f32.gmra.mrb[0].mxu0 %v555
        %v692 = vpop.f32.mrb[0].mxu0
        %v693 = vadd.f32 0.0, %v692
        %v694 = vpop.f32.mrb[0].mxu0
        %v695 = vadd.f32 0.0, %v694
        %696 = vmatprep.mubr.f32.mxu0 0.0
        %697 = vmatmul.mubr.f32.gmra.mrb[0].mxu0 %v558
        %v698 = vpop.f32.mrb[0].mxu0
        %v699 = vadd.f32 0.0, %v698
        %v700 = vpop.f32.mrb[0].mxu0
        %v701 = vadd.f32 0.0, %v700
        %702 = vmatprep.mubr.f32.mxu0 0.0
        %703 = vmatmul.mubr.f32.gmra.mrb[0].mxu0 %v561
        %v704 = vpop.f32.mrb[0].mxu0
        %v705 = vadd.f32 0.0, %v704
        %v706 = vpop.f32.mrb[0].mxu0
        %v707 = vadd.f32 0.0, %v706
        %708 = vmatprep.mubr.f32.mxu0 0.0
        %709 = vmatmul.mubr.f32.gmra.mrb[0].mxu0 %v564
        %v710 = vpop.f32.mrb[0].mxu0
        %v711 = vadd.f32 0.0, %v710
        %v712 = vpop.f32.mrb[0].mxu0
        %v713 = vadd.f32 0.0, %v712
        %714 = vmatprep.mubr.f32.mxu0 0.0
        %715 = vmatmul.mubr.f32.gmra.mrb[0].mxu0 %v567
        %v716 = vpop.f32.mrb[0].mxu0
        %v717 = vadd.f32 0.0, %v716
        %v718 = vpop.f32.mrb[0].mxu0
        %v719 = vadd.f32 0.0, %v718
        %720 = vmatprep.mubr.f32.mxu0 0.0
        %721 = vmatmul.mubr.f32.gmra.mrb[0].mxu0 %v570
        %v722 = vpop.f32.mrb[0].mxu0
        %v723 = vadd.f32 0.0, %v722
        %v724 = vpop.f32.mrb[0].mxu0
        %v725 = vadd.f32 0.0, %v724
        %726 = vmatprep.mubr.f32.mxu0 0.0
        %727 = vmatmul.mubr.f32.gmra.mrb[0].mxu0 %v573
        %v728 = vpop.f32.mrb[0].mxu0
        %v729 = vadd.f32 0.0, %v728
        %v730 = vpop.f32.mrb[0].mxu0
        %v731 = vadd.f32 0.0, %v730
        %732 = vmatprep.mubr.f32.mxu0 0.0
        %733 = vmatmul.mubr.f32.gmra.mrb[0].mxu0 %v576
        %v734 = vpop.f32.mrb[0].mxu0
        %v735 = vadd.f32 0.0, %v734
        %v736 = vpop.f32.mrb[0].mxu0
        %v737 = vadd.f32 0.0, %v736
        %738 = vdwg.mxu0
        %v739 = vadd.f32 %v415, %v645
        %v740 = vadd.f32 %v421, %v651
        %v741 = vadd.f32 %v427, %v657
        %v742 = vadd.f32 %v433, %v663
        %v743 = vadd.f32 %v439, %v669
        %v744 = vadd.f32 %v445, %v675
        %v745 = vadd.f32 %v451, %v681
        %v746 = vadd.f32 %v457, %v687
        %v747 = vadd.f32 %v463, %v693
        %v748 = vadd.f32 %v469, %v699
        %v749 = vadd.f32 %v475, %v705
        %v750 = vadd.f32 %v481, %v711
        %v751 = vadd.f32 %v487, %v717
        %v752 = vadd.f32 %v493, %v723
        %v753 = vadd.f32 %v499, %v729
        %v754 = vadd.f32 %v505, %v735
        %v755 = vmul.f32 %v417, %v647
        %v756 = vmul.f32 %v423, %v653
        %v757 = vmul.f32 %v429, %v659
        %v758 = vmul.f32 %v435, %v665
        %v759 = vmul.f32 %v441, %v671
        %v760 = vmul.f32 %v447, %v677
        %v761 = vmul.f32 %v453, %v683
        %v762 = vmul.f32 %v459, %v689
        %v763 = vmul.f32 %v465, %v695
        %v764 = vmul.f32 %v471, %v701
        %v765 = vmul.f32 %v477, %v707
        %v766 = vmul.f32 %v483, %v713
        %v767 = vmul.f32 %v489, %v719
        %v768 = vmul.f32 %v495, %v725
        %v769 = vmul.f32 %v501, %v731
        %v770 = vmul.f32 %v507, %v737
        %v771 = vld [vmem:[%s4] sm:$0xff]
        %v772 = vld [vmem:[%s4 + $0x8] sm:$0xff]
        %v773 = vld [vmem:[%s4 + $0x10] sm:$0xff]
        %v774 = vld [vmem:[%s4 + $0x18] sm:$0xff]
        %v775 = vld [vmem:[%s4 + $0x20] sm:$0xff]
        %v776 = vld [vmem:[%s4 + $0x28] sm:$0xff]
        %v777 = vld [vmem:[%s4 + $0x30] sm:$0xff]
        %v778 = vld [vmem:[%s4 + $0x38] sm:$0xff]
        %vm779 = vcmask 523264
        %v781 = vsel %vm779, %v755, 0
        %v784 = vsel %vm779, %v756, 0
        %v787 = vsel %vm779, %v757, 0
        %v790 = vsel %vm779, %v758, 0
        %v793 = vsel %vm779, %v759, 0
        %v796 = vsel %vm779, %v760, 0
        %v799 = vsel %vm779, %v761, 0
        %v802 = vsel %vm779, %v762, 0
        %v805 = vsel %vm779, %v763, 0
        %v808 = vsel %vm779, %v764, 0
        %v811 = vsel %vm779, %v765, 0
        %v814 = vsel %vm779, %v766, 0
        %v817 = vsel %vm779, %v767, 0
        %v820 = vsel %vm779, %v768, 0
        %v823 = vsel %vm779, %v769, 0
        %v826 = vsel %vm779, %v770, 0
        %828 = vmatprep.subr.mxu0 0.0
        %829 = vmatpush1.msra.mxu0 %v771
        %830 = vmatprep.subr.mxu0 0.0
        %831 = vmatpush1.msra.mxu0 %v772
        %832 = vmatprep.subr.mxu0 0.0
        %833 = vmatpush1.msra.mxu0 %v773
        %834 = vmatprep.subr.mxu0 0.0
        %835 = vmatpush1.msra.mxu0 %v774
        %836 = vmatprep.subr.mxu0 0.0
        %837 = vmatpush1.msra.mxu0 %v775
        %838 = vmatprep.subr.mxu0 0.0
        %839 = vmatpush1.msra.mxu0 %v776
        %840 = vmatprep.subr.mxu0 0.0
        %841 = vmatpush1.msra.mxu0 %v777
        %842 = vmatprep.subr.mxu0 0.0
        %843 = vmatpush1.msra.mxu0 %v778
        %844 = vmatprep.subr.mxu0 0.0
        %845 = vmatpush1.msra.mxu0 0.0
        %846 = vmatprep.subr.mxu0 0.0
        %847 = vmatpush1.msra.mxu0 0.0
        %848 = vmatprep.subr.mxu0 0.0
        %849 = vmatpush1.msra.mxu0 0.0
        %850 = vmatprep.subr.mxu0 0.0
        %851 = vmatpush1.msra.mxu0 0.0
        %852 = vmatprep.subr.mxu0 0.0
        %853 = vmatpush1.msra.mxu0 0.0
        %854 = vmatprep.subr.mxu0 0.0
        %855 = vmatpush1.msra.mxu0 0.0
        %856 = vmatprep.subr.mxu0 0.0
        %857 = vmatpush1.msra.mxu0 0.0
        %858 = vmatprep.subr.mxu0 0.0
        %859 = vmatpush1.msra.mxu0 0.0
        %860 = vmatprep.subr.mxu0 0.0
        %861 = vmatpush1.msra.mxu0 0.0
        %862 = vmatprep.subr.mxu0 0.0
        %863 = vmatpush1.msra.mxu0 0.0
        %864 = vmatprep.subr.mxu0 0.0
        %865 = vmatpush1.msra.mxu0 0.0
        %866 = vmatprep.subr.mxu0 0.0
        %867 = vmatpush1.msra.mxu0 0.0
        %868 = vmatprep.subr.mxu0 0.0
        %869 = vmatpush1.msra.mxu0 0.0
        %870 = vmatprep.subr.mxu0 0.0
        %871 = vmatpush1.msra.mxu0 0.0
        %872 = vmatprep.subr.mxu0 0.0
        %873 = vmatpush1.msra.mxu0 0.0
        %874 = vmatprep.subr.mxu0 0.0
        %875 = vmatpush1.msra.mxu0 0.0
        %876 = vmatprep.subr.mxu0 0.0
        %877 = vmatpush1.msra.mxu0 0.0
        %878 = vmatprep.subr.mxu0 0.0
        %879 = vmatpush1.msra.mxu0 0.0
        %880 = vmatprep.subr.mxu0 0.0
        %881 = vmatpush1.msra.mxu0 0.0
        %882 = vmatprep.subr.mxu0 0.0
        %883 = vmatpush1.msra.mxu0 0.0
        %884 = vmatprep.subr.mxu0 0.0
        %885 = vmatpush1.msra.mxu0 0.0
        %886 = vmatprep.subr.mxu0 0.0
        %887 = vmatpush1.msra.mxu0 0.0
        %888 = vmatprep.subr.mxu0 0.0
        %889 = vmatpush1.msra.mxu0 0.0
        %890 = vmatprep.subr.mxu0 0.0
        %891 = vmatpush1.msra.mxu0 0.0
        %892 = vmatprep.mubr.f32.mxu0 0.0
        %893 = vmatmul.mubr.f32.gmra.mrb[0].mxu0 %v781
        %v894 = vpop.f32.mrb[0].mxu0
        %v895 = vadd.f32 %v739, %v894
        %v896 = vpop.f32.mrb[0].mxu0
        %897 = vmatprep.mubr.f32.mxu0 0.0
        %898 = vmatmul.mubr.f32.gmra.mrb[0].mxu0 %v784
        %v899 = vpop.f32.mrb[0].mxu0
        %v900 = vadd.f32 %v740, %v899
        %v901 = vpop.f32.mrb[0].mxu0
        %902 = vmatprep.mubr.f32.mxu0 0.0
        %903 = vmatmul.mubr.f32.gmra.mrb[0].mxu0 %v787
        %v904 = vpop.f32.mrb[0].mxu0
        %v905 = vadd.f32 %v741, %v904
        %v906 = vpop.f32.mrb[0].mxu0
        %907 = vmatprep.mubr.f32.mxu0 0.0
        %908 = vmatmul.mubr.f32.gmra.mrb[0].mxu0 %v790
        %v909 = vpop.f32.mrb[0].mxu0
        %v910 = vadd.f32 %v742, %v909
        %v911 = vpop.f32.mrb[0].mxu0
        %912 = vmatprep.mubr.f32.mxu0 0.0
        %913 = vmatmul.mubr.f32.gmra.mrb[0].mxu0 %v793
        %v914 = vpop.f32.mrb[0].mxu0
        %v915 = vadd.f32 %v743, %v914
        %v916 = vpop.f32.mrb[0].mxu0
        %917 = vmatprep.mubr.f32.mxu0 0.0
        %918 = vmatmul.mubr.f32.gmra.mrb[0].mxu0 %v796
        %v919 = vpop.f32.mrb[0].mxu0
        %v920 = vadd.f32 %v744, %v919
        %v921 = vpop.f32.mrb[0].mxu0
        %922 = vmatprep.mubr.f32.mxu0 0.0
        %923 = vmatmul.mubr.f32.gmra.mrb[0].mxu0 %v799
        %v924 = vpop.f32.mrb[0].mxu0
        %v925 = vadd.f32 %v745, %v924
        %v926 = vpop.f32.mrb[0].mxu0
        %927 = vmatprep.mubr.f32.mxu0 0.0
        %928 = vmatmul.mubr.f32.gmra.mrb[0].mxu0 %v802
        %v929 = vpop.f32.mrb[0].mxu0
        %v930 = vadd.f32 %v746, %v929
        %v931 = vpop.f32.mrb[0].mxu0
        %932 = vmatprep.mubr.f32.mxu0 0.0
        %933 = vmatmul.mubr.f32.gmra.mrb[0].mxu0 %v805
        %v934 = vpop.f32.mrb[0].mxu0
        %v935 = vadd.f32 %v747, %v934
        %v936 = vpop.f32.mrb[0].mxu0
        %937 = vmatprep.mubr.f32.mxu0 0.0
        %938 = vmatmul.mubr.f32.gmra.mrb[0].mxu0 %v808
        %v939 = vpop.f32.mrb[0].mxu0
        %v940 = vadd.f32 %v748, %v939
        %v941 = vpop.f32.mrb[0].mxu0
        %942 = vmatprep.mubr.f32.mxu0 0.0
        %943 = vmatmul.mubr.f32.gmra.mrb[0].mxu0 %v811
        %v944 = vpop.f32.mrb[0].mxu0
        %v945 = vadd.f32 %v749, %v944
        %v946 = vpop.f32.mrb[0].mxu0
        %947 = vmatprep.mubr.f32.mxu0 0.0
        %948 = vmatmul.mubr.f32.gmra.mrb[0].mxu0 %v814
        %v949 = vpop.f32.mrb[0].mxu0
        %v950 = vadd.f32 %v750, %v949
        %v951 = vpop.f32.mrb[0].mxu0
        %952 = vmatprep.mubr.f32.mxu0 0.0
        %953 = vmatmul.mubr.f32.gmra.mrb[0].mxu0 %v817
        %v954 = vpop.f32.mrb[0].mxu0
        %v955 = vadd.f32 %v751, %v954
        %v956 = vpop.f32.mrb[0].mxu0
        %957 = vmatprep.mubr.f32.mxu0 0.0
        %958 = vmatmul.mubr.f32.gmra.mrb[0].mxu0 %v820
        %v959 = vpop.f32.mrb[0].mxu0
        %v960 = vadd.f32 %v752, %v959
        %v961 = vpop.f32.mrb[0].mxu0
        %962 = vmatprep.mubr.f32.mxu0 0.0
        %963 = vmatmul.mubr.f32.gmra.mrb[0].mxu0 %v823
        %v964 = vpop.f32.mrb[0].mxu0
        %v965 = vadd.f32 %v753, %v964
        %v966 = vpop.f32.mrb[0].mxu0
        %967 = vmatprep.mubr.f32.mxu0 0.0
        %968 = vmatmul.mubr.f32.gmra.mrb[0].mxu0 %v826
        %v969 = vpop.f32.mrb[0].mxu0
        %v970 = vadd.f32 %v754, %v969
        %v971 = vpop.f32.mrb[0].mxu0
        %972 = vdwg.mxu0
        %v973 = vld [vmem:[%s5] sm:$0x1]
        %v975 = vlaneseq
        %v976 = vshrl.u32 %v975, 7
        %v977 = vsub.s32 0, %v976
        %v978 = vrot.slane %v973, %v977
        %v980 = vadd.f32 %v895, %v978
        %v981 = vadd.f32 %v900, %v978
        %v982 = vadd.f32 %v905, %v978
        %v983 = vadd.f32 %v910, %v978
        %v984 = vadd.f32 %v915, %v978
        %v985 = vadd.f32 %v920, %v978
        %v986 = vadd.f32 %v925, %v978
        %v987 = vadd.f32 %v930, %v978
        %v988 = vadd.f32 %v935, %v978
        %v989 = vadd.f32 %v940, %v978
        %v990 = vadd.f32 %v945, %v978
        %v991 = vadd.f32 %v950, %v978
        %v992 = vadd.f32 %v955, %v978
        %v993 = vadd.f32 %v960, %v978
        %v994 = vadd.f32 %v965, %v978
        %v995 = vadd.f32 %v970, %v978
        %996 = vst [vmem:[%s261] sm:$0xff] %v980
        %997 = vst [vmem:[%s261 + $0x8] sm:$0xff] %v981
        %998 = vst [vmem:[%s261 + $0x10] sm:$0xff] %v982
        %999 = vst [vmem:[%s261 + $0x18] sm:$0xff] %v983
        %1000 = vst [vmem:[%s261 + $0x20] sm:$0xff] %v984
        %1001 = vst [vmem:[%s261 + $0x28] sm:$0xff] %v985
        %1002 = vst [vmem:[%s261 + $0x30] sm:$0xff] %v986
        %1003 = vst [vmem:[%s261 + $0x38] sm:$0xff] %v987
        %1004 = vst [vmem:[%s261 + $0x40] sm:$0xff] %v988
        %1005 = vst [vmem:[%s261 + $0x48] sm:$0xff] %v989
        %1006 = vst [vmem:[%s261 + $0x50] sm:$0xff] %v990
        %1007 = vst [vmem:[%s261 + $0x58] sm:$0xff] %v991
        %1008 = vst [vmem:[%s261 + $0x60] sm:$0xff] %v992
        %1009 = vst [vmem:[%s261 + $0x68] sm:$0xff] %v993
        %1010 = vst [vmem:[%s261 + $0x70] sm:$0xff] %v994
        %1011 = vst [vmem:[%s261 + $0x78] sm:$0xff] %v995
        %s1012 = sand.u32 %s164, 1
        %s1013 = scalar_lea.sflag [#allocation3], %s1012
        %s1014 = sand.u32 %s164, 1
        %s1015 = smul.addr %s1014, 128
        %s1016 = scalar_lea.vmem [#allocation2], %s1015
        // Predicated region
        $region45: #{tpu_custom_call.1} parent=43 // pred_check
          %p1017 = pneg %p174
        $region46: #{tpu_custom_call.1} parent=43 // pred_check_branch
          %1019 = sbr.rel (%p1017) target = $region48
        $region47: #{tpu_custom_call.1} parent=43 // pred_region
          %s1020 = smul.u32 16, %s20
          %s1022 = ssub.s32 2048, 2048
          %1023 = vsyncadd %s1013, %s1022
          %s1024 = smul.addr %s1020, 128
          %s1025 = scalar_lea.hbm %s6, %s1024
          %s1026 = sshll.u32 %s1016, 4
          %s1027 = int_to_ptr.vmem [resolvable:$true] %s1026
          %1032 = dma.vmem_to_hbm [thread:$0]  %s1027, 2048, %s1025, %s1013, 128, 128, 8
        $region48: #{tpu_custom_call.1} parent=43 // pred_fallthru
          _
      $region44: #{tpu_custom_call.1} parent=5 // pred_fallthru
        _
      %p1033 = scmp.le.s32.totalorder 2, %s15
      // Predicated region
      $region49: #{tpu_custom_call.1} parent=5 // pred_check
        %p1034 = pneg %p1033
      $region50: #{tpu_custom_call.1} parent=5 // pred_check_branch
        %1036 = sbr.rel (%p1034) target = $region52
      $region51: #{tpu_custom_call.1} parent=5 // pred_region
        %s1037 = ssub.s32 %s15, 2
        // Predicated region
        $region53: #{tpu_custom_call.1} parent=51 // pred_check
          %p1038 = pneg %p180
        $region54: #{tpu_custom_call.1} parent=51 // pred_check_branch
          %1040 = sbr.rel (%p1038) target = $region56
        $region55: #{tpu_custom_call.1} parent=51 // pred_region
          %s1041 = sand.u32 %s165, 1
          %s1042 = scalar_lea.sflag [#allocation3], %s1041
          %s1043 = sand.u32 %s165, 1
          %s1044 = smul.addr %s1043, 128
          %s1045 = scalar_lea.vmem [#allocation2], %s1044
          %1046 = dma.done %s1042, 2048
        $region56: #{tpu_custom_call.1} parent=51 // pred_fallthru
          _
      $region52: #{tpu_custom_call.1} parent=5 // pred_fallthru
        _
    $region6: #{tpu_custom_call.1} parent=1 // loop_footer
      %s19 = sadd.s32 1, %s15
    $region7: #{tpu_custom_call.1} parent=1 // loop_footer_branch
      %14 = sbr.rel target = $region3
    $region8: #{tpu_custom_call.1} parent=1 // loop_exit
      _
    %1047 = vsyncpa [#allocation3], 1
    %s1048 = scalar_lea.sflag [#allocation3], 1
    %1049 = vsyncpa %s1048, 1

// kernel: tpu_custom_call.1
$region0: #{tpu_custom_call.1}
  #allocation0 [shape = 'u32[]', space=smem, size = 0x4, offset = 0x4, fixed_abs, tag = 'smem constant byte address 0x4 - core index']
  #allocation1 [shape = 'u32[144,128]{1,0:T(1,128)}', space=vmem, size = 0x12000, scoped, tag = 'internal scratch']
  %s0 = inlined_call_operand.vmem [shape: f32[256,32], index: 0, kind: input, shape index: {}]
  %s1 = inlined_call_operand.vmem [shape: f32[256,16], index: 1, kind: input, shape index: {}]
  %s2 = inlined_call_operand.vmem [shape: f32[32,192], index: 2, kind: input, shape index: {}]
  %s3 = inlined_call_operand.vmem [shape: f32[16,192], index: 3, kind: input, shape index: {}]
  %s4 = inlined_call_operand.vmem [shape: f32[64,128], index: 4, kind: input, shape index: {}]
  %s5 = inlined_call_operand.vmem [shape: f32[1,128], index: 5, kind: input, shape index: {}]
  %s6 = inlined_call_operand.hbm [shape: f32[256,128], index: 6, kind: output, shape index: {}]
  %s7 = sld [smem:[#allocation0]]
  $region57: #{tpu_custom_call.1} parent=0
    _
  %s9 = ssub.s32 1, %s7
  %s10 = scalar_select 0, %s9, %s7
  $region1: #{tpu_custom_call.1} parent=0
    #allocation2 [shape = 'u8[131072]{0}', space=vmem, size = 0x20000, scoped, tag = 'output window, operand 0']
    #allocation3 [shape = 's32[2]{0}', space=sflag, size = 0x8, scoped, tag = 'scoped memory for tpu_custom_call.1']
    %11 = vsyncpa [#allocation3], 0
    %s12 = scalar_lea.sflag [#allocation3], 1
    %13 = vsyncpa %s12, 0
    loop: start=0, step=1, limit=4
    $region2: #{tpu_custom_call.1} parent=1 // loop_pre_header
      _
    $region3: #{tpu_custom_call.1} parent=1 // loop_header
      %s15 = sphi 0, %s19
      %p16 = scmp.ge.s32.totalorder %s15, 4
      %s25 = sphi 0, %s27
      %s28 = sphi 0, %s25
      %s29 = sphi 0, %s28
      %s45 = sphi 0, %s29
      %s51 = sphi 0, %s53
      %s54 = sphi 0, %s51
      %s55 = sphi 0, %s54
      %s71 = sphi 0, %s55
      %s75 = sphi 0, %s75
      %s77 = sphi 0, %s75
      %s78 = sphi 0, %s77
      %s92 = sphi 0, %s78
      %s96 = sphi 0, %s96
      %s98 = sphi 0, %s96
      %s99 = sphi 0, %s98
      %s113 = sphi 0, %s99
      %s117 = sphi 0, %s117
      %s119 = sphi 0, %s117
      %s120 = sphi 0, %s119
      %s134 = sphi 0, %s120
      %s138 = sphi 0, %s138
      %s140 = sphi 0, %s138
      %s141 = sphi 0, %s140
      %s155 = sphi 0, %s141
      %s161 = sphi 0, %s163
      %s164 = sphi 0, %s161
      %s165 = sphi 0, %s164
      %s181 = sphi 0, %s165
    $region4: #{tpu_custom_call.1} parent=1 // loop_header_branch
      %18 = sbr.rel (%p16) target = $region8
    $region5: #{tpu_custom_call.1} parent=1 // loop_body
      %s20 = ssub.s32 %s15, 1
      %s21 = ssub.s32 %s15, 2
      %s22 = sadd.s32 %s15, 1
      %s23 = ssub.s32 %s15, %s22
      %p24 = scmp.eq.s32.totalorder %s23, 0
      %s26 = sadd.s32 %s25, 1
      %s27 = scalar_select %p24, %s25, %s26
      %p30 = pneg %p24
      %p31 = scmp.eq.s32.totalorder %s15, 1
      %p32 = por %p30, %p31
      %p33 = scmp.ne.s32.totalorder %s25, %s28
      %p34 = scmp.eq.s32.totalorder %s15, 0
      %p35 = por %p33, %p34
      %p36 = scmp.ne.s32.totalorder %s25, %s28
      %p37 = scmp.eq.s32.totalorder %s20, 1
      %p38 = por %p36, %p37
      %p39 = scmp.ne.s32.totalorder %s28, %s29
      %p40 = scmp.eq.s32.totalorder %s20, 0
      %p41 = por %p39, %p40
      %p42 = scmp.ne.s32.totalorder %s28, %s29
      %p43 = scmp.eq.s32.totalorder %s21, 1
      %p44 = por %p42, %p43
      %p46 = scmp.ne.s32.totalorder %s29, %s45
      %p47 = scmp.eq.s32.totalorder %s21, 0
      %p48 = por %p46, %p47
      %s49 = ssub.s32 %s15, %s22
      %p50 = scmp.eq.s32.totalorder %s49, 0
      %s52 = sadd.s32 %s51, 1
      %s53 = scalar_select %p50, %s51, %s52
      %p56 = pneg %p50
      %p57 = scmp.eq.s32.totalorder %s15, 1
      %p58 = por %p56, %p57
      %p59 = scmp.ne.s32.totalorder %s51, %s54
      %p60 = scmp.eq.s32.totalorder %s15, 0
      %p61 = por %p59, %p60
      %p62 = scmp.ne.s32.totalorder %s51, %s54
      %p63 = scmp.eq.s32.totalorder %s20, 1
      %p64 = por %p62, %p63
      %p65 = scmp.ne.s32.totalorder %s54, %s55
      %p66 = scmp.eq.s32.totalorder %s20, 0
      %p67 = por %p65, %p66
      %p68 = scmp.ne.s32.totalorder %s54, %s55
      %p69 = scmp.eq.s32.totalorder %s21, 1
      %p70 = por %p68, %p69
      %p72 = scmp.ne.s32.totalorder %s55, %s71
      %p73 = scmp.eq.s32.totalorder %s21, 0
      %p74 = por %p72, %p73
      %s76 = sadd.s32 %s75, 1
      %p79 = scmp.eq.s32.totalorder %s15, 1
      %p80 = scmp.ne.s32.totalorder %s75, %s77
      %p81 = scmp.eq.s32.totalorder %s15, 0
      %p82 = por %p80, %p81
      %p83 = scmp.ne.s32.totalorder %s75, %s77
      %p84 = scmp.eq.s32.totalorder %s20, 1
      %p85 = por %p83, %p84
      %p86 = scmp.ne.s32.totalorder %s77, %s78
      %p87 = scmp.eq.s32.totalorder %s20, 0
      %p88 = por %p86, %p87
      %p89 = scmp.ne.s32.totalorder %s77, %s78
      %p90 = scmp.eq.s32.totalorder %s21, 1
      %p91 = por %p89, %p90
      %p93 = scmp.ne.s32.totalorder %s78, %s92
      %p94 = scmp.eq.s32.totalorder %s21, 0
      %p95 = por %p93, %p94
      %s97 = sadd.s32 %s96, 1
      %p100 = scmp.eq.s32.totalorder %s15, 1
      %p101 = scmp.ne.s32.totalorder %s96, %s98
      %p102 = scmp.eq.s32.totalorder %s15, 0
      %p103 = por %p101, %p102
      %p104 = scmp.ne.s32.totalorder %s96, %s98
      %p105 = scmp.eq.s32.totalorder %s20, 1
      %p106 = por %p104, %p105
      %p107 = scmp.ne.s32.totalorder %s98, %s99
      %p108 = scmp.eq.s32.totalorder %s20, 0
      %p109 = por %p107, %p108
      %p110 = scmp.ne.s32.totalorder %s98, %s99
      %p111 = scmp.eq.s32.totalorder %s21, 1
      %p112 = por %p110, %p111
      %p114 = scmp.ne.s32.totalorder %s99, %s113
      %p115 = scmp.eq.s32.totalorder %s21, 0
      %p116 = por %p114, %p115
      %s118 = sadd.s32 %s117, 1
      %p121 = scmp.eq.s32.totalorder %s15, 1
      %p122 = scmp.ne.s32.totalorder %s117, %s119
      %p123 = scmp.eq.s32.totalorder %s15, 0
      %p124 = por %p122, %p123
      %p125 = scmp.ne.s32.totalorder %s117, %s119
      %p126 = scmp.eq.s32.totalorder %s20, 1
      %p127 = por %p125, %p126
      %p128 = scmp.ne.s32.totalorder %s119, %s120
      %p129 = scmp.eq.s32.totalorder %s20, 0
      %p130 = por %p128, %p129
      %p131 = scmp.ne.s32.totalorder %s119, %s120
      %p132 = scmp.eq.s32.totalorder %s21, 1
      %p133 = por %p131, %p132
      %p135 = scmp.ne.s32.totalorder %s120, %s134
      %p136 = scmp.eq.s32.totalorder %s21, 0
      %p137 = por %p135, %p136
      %s139 = sadd.s32 %s138, 1
      %p142 = scmp.eq.s32.totalorder %s15, 1
      %p143 = scmp.ne.s32.totalorder %s138, %s140
      %p144 = scmp.eq.s32.totalorder %s15, 0
      %p145 = por %p143, %p144
      %p146 = scmp.ne.s32.totalorder %s138, %s140
      %p147 = scmp.eq.s32.totalorder %s20, 1
      %p148 = por %p146, %p147
      %p149 = scmp.ne.s32.totalorder %s140, %s141
      %p150 = scmp.eq.s32.totalorder %s20, 0
      %p151 = por %p149, %p150
      %p152 = scmp.ne.s32.totalorder %s140, %s141
      %p153 = scmp.eq.s32.totalorder %s21, 1
      %p154 = por %p152, %p153
      %p156 = scmp.ne.s32.totalorder %s141, %s155
      %p157 = scmp.eq.s32.totalorder %s21, 0
      %p158 = por %p156, %p157
      %s159 = ssub.s32 %s15, %s22
      %p160 = scmp.eq.s32.totalorder %s159, 0
      %s162 = sadd.s32 %s161, 1
      %s163 = scalar_select %p160, %s161, %s162
      %p166 = pneg %p160
      %p167 = scmp.eq.s32.totalorder %s15, 1
      %p168 = por %p166, %p167
      %p169 = scmp.ne.s32.totalorder %s161, %s164
      %p170 = scmp.eq.s32.totalorder %s15, 0
      %p171 = por %p169, %p170
      %p172 = scmp.ne.s32.totalorder %s161, %s164
      %p173 = scmp.eq.s32.totalorder %s20, 1
      %p174 = por %p172, %p173
      %p175 = scmp.ne.s32.totalorder %s164, %s165
      %p176 = scmp.eq.s32.totalorder %s20, 0
      %p177 = por %p175, %p176
      %p178 = scmp.ne.s32.totalorder %s164, %s165
      %p179 = scmp.eq.s32.totalorder %s21, 1
      %p180 = por %p178, %p179
      %p182 = scmp.ne.s32.totalorder %s165, %s181
      %p183 = scmp.eq.s32.totalorder %s21, 0
      %p184 = por %p182, %p183
      %p185 = scmp.le.s32.totalorder 1, %s15
      %p186 = scmp.lt.s32.totalorder %s15, 3
      %p187 = pnand %p185, %p186
      %p188 = pneg %p187
      // Predicated region
      $region9: #{tpu_custom_call.1} parent=5 // pred_check
        _
      $region10: #{tpu_custom_call.1} parent=5 // pred_check_branch
        %190 = sbr.rel (%p187) target = $region12
      $region11: #{tpu_custom_call.1} parent=5 // pred_region
        %s191 = ssub.s32 %s15, 1
        // Predicated region
        $region13: #{tpu_custom_call.1} parent=11 // pred_check
          %p192 = pneg %p88
        $region14: #{tpu_custom_call.1} parent=11 // pred_check_branch
          %194 = sbr.rel (%p192) target = $region16
        $region15: #{tpu_custom_call.1} parent=11 // pred_region
          _
        $region16: #{tpu_custom_call.1} parent=11 // pred_fallthru
          _
        // Predicated region
        $region17: #{tpu_custom_call.1} parent=11 // pred_check
          %p195 = pneg %p109
        $region18: #{tpu_custom_call.1} parent=11 // pred_check_branch
          %197 = sbr.rel (%p195) target = $region20
        $region19: #{tpu_custom_call.1} parent=11 // pred_region
          _
        $region20: #{tpu_custom_call.1} parent=11 // pred_fallthru
          _
        // Predicated region
        $region21: #{tpu_custom_call.1} parent=11 // pred_check
          %p198 = pneg %p130
        $region22: #{tpu_custom_call.1} parent=11 // pred_check_branch
          %200 = sbr.rel (%p198) target = $region24
        $region23: #{tpu_custom_call.1} parent=11 // pred_region
          _
        $region24: #{tpu_custom_call.1} parent=11 // pred_fallthru
          _
        // Predicated region
        $region25: #{tpu_custom_call.1} parent=11 // pred_check
          %p201 = pneg %p151
        $region26: #{tpu_custom_call.1} parent=11 // pred_check_branch
          %203 = sbr.rel (%p201) target = $region28
        $region27: #{tpu_custom_call.1} parent=11 // pred_region
          _
        $region28: #{tpu_custom_call.1} parent=11 // pred_fallthru
          _
      $region12: #{tpu_custom_call.1} parent=5 // pred_fallthru
        _
      %p204 = scmp.lt.s32.totalorder %s15, 2
      // Predicated region
      $region29: #{tpu_custom_call.1} parent=5 // pred_check
        %p205 = pneg %p204
      $region30: #{tpu_custom_call.1} parent=5 // pred_check_branch
        %207 = sbr.rel (%p205) target = $region32
      $region31: #{tpu_custom_call.1} parent=5 // pred_region
        // Predicated region
        $region33: #{tpu_custom_call.1} parent=31 // pred_check
          %p208 = pneg %p35
        $region34: #{tpu_custom_call.1} parent=31 // pred_check_branch
          %210 = sbr.rel (%p208) target = $region36
        $region35: #{tpu_custom_call.1} parent=31 // pred_region
          %s211 = smul.u32 16, %s15
          %p212 = scmp.lt.s32.totalorder %s211, 31
          %s213 = scalar_select %p212, %s211, 31
          %s214 = smul.addr %s213, 8
          %s215 = scalar_lea.vmem %s0, %s214
          %s216 = smul.u32 16, %s15
        $region36: #{tpu_custom_call.1} parent=31 // pred_fallthru
          _
        // Predicated region
        $region37: #{tpu_custom_call.1} parent=31 // pred_check
          %p217 = pneg %p61
        $region38: #{tpu_custom_call.1} parent=31 // pred_check_branch
          %219 = sbr.rel (%p217) target = $region40
        $region39: #{tpu_custom_call.1} parent=31 // pred_region
          %s220 = smul.u32 16, %s15
          %p221 = scmp.lt.s32.totalorder %s220, 31
          %s222 = scalar_select %p221, %s220, 31
          %s223 = smul.addr %s222, 8
          %s224 = scalar_lea.vmem %s1, %s223
          %s225 = smul.u32 16, %s15
        $region40: #{tpu_custom_call.1} parent=31 // pred_fallthru
          _
      $region32: #{tpu_custom_call.1} parent=5 // pred_fallthru
        _
      %p226 = scmp.le.s32.totalorder 1, %s15
      %p227 = scmp.lt.s32.totalorder %s15, 3
      %p228 = pnand %p226, %p227
      %p229 = pneg %p228
      // Predicated region
      $region41: #{tpu_custom_call.1} parent=5 // pred_check
        _
      $region42: #{tpu_custom_call.1} parent=5 // pred_check_branch
        %231 = sbr.rel (%p228) target = $region44
      $region43: #{tpu_custom_call.1} parent=5 // pred_region
        %s232 = ssub.s32 %s15, 1
        %s233 = smul.u32 16, %s20
        %p234 = scmp.lt.s32.totalorder %s233, 31
        %s235 = scalar_select %p234, %s233, 31
        %s236 = smul.addr %s235, 8
        %s237 = scalar_lea.vmem %s0, %s236
        %p238 = pneg %p41
        %p239 = pneg %p38
        %s240 = smul.u32 16, %s20
        %p241 = scmp.lt.s32.totalorder %s240, 31
        %s242 = scalar_select %p241, %s240, 31
        %s243 = smul.addr %s242, 8
        %s244 = scalar_lea.vmem %s1, %s243
        %p245 = pneg %p67
        %p246 = pneg %p64
        %p247 = pneg %p88
        %p248 = pneg %p85
        %p249 = pneg %p109
        %p250 = pneg %p106
        %p251 = pneg %p130
        %p252 = pneg %p127
        %p253 = pneg %p151
        %p254 = pneg %p148
        %p255 = pneg %p177
        %p256 = pneg %p174
        %s257 = sand.u32 %s164, 1
        %s258 = scalar_lea.sflag [#allocation3], %s257
        %s259 = sand.u32 %s164, 1
        %s260 = smul.addr %s259, 128
        %s261 = scalar_lea.vmem [#allocation2], %s260
        %s262 = smul.u32 16, %s20
        %p263 = scmp.lt.s32.totalorder %s262, 31
        %s264 = scalar_select %p263, %s262, 31
        %s265 = smul.addr %s264, 8
        %s266 = scalar_lea.vmem %s0, %s265
        %s267 = smul.u32 16, %s20
        %s268 = smul.u32 16, %s20
        %p269 = scmp.lt.s32.totalorder %s268, 31
        %s270 = scalar_select %p269, %s268, 31
        %s271 = smul.addr %s270, 8
        %s272 = scalar_lea.vmem %s1, %s271
        %s273 = smul.u32 16, %s20
        %s274 = smul.u32 16, %s20
        %v275 = vld [vmem:[%s266] sm:$0xff]
        %v276 = vld [vmem:[%s266 + $0x8] sm:$0xff]
        %v277 = vld [vmem:[%s266 + $0x10] sm:$0xff]
        %v278 = vld [vmem:[%s266 + $0x18] sm:$0xff]
        %v279 = vld [vmem:[%s266 + $0x20] sm:$0xff]
        %v280 = vld [vmem:[%s266 + $0x28] sm:$0xff]
        %v281 = vld [vmem:[%s266 + $0x30] sm:$0xff]
        %v282 = vld [vmem:[%s266 + $0x38] sm:$0xff]
        %v283 = vld [vmem:[%s266 + $0x40] sm:$0xff]
        %v284 = vld [vmem:[%s266 + $0x48] sm:$0xff]
        %v285 = vld [vmem:[%s266 + $0x50] sm:$0xff]
        %v286 = vld [vmem:[%s266 + $0x58] sm:$0xff]
        %v287 = vld [vmem:[%s266 + $0x60] sm:$0xff]
        %v288 = vld [vmem:[%s266 + $0x68] sm:$0xff]
        %v289 = vld [vmem:[%s266 + $0x70] sm:$0xff]
        %v290 = vld [vmem:[%s266 + $0x78] sm:$0xff]
        %v291 = vld [vmem:[%s2] sm:$0xff]
        %v292 = vld [vmem:[%s2 + $0x8] sm:$0xff]
        %v293 = vld [vmem:[%s2 + $0x10] sm:$0xff]
        %v294 = vld [vmem:[%s2 + $0x18] sm:$0xff]
        %v295 = vld [vmem:[%s2 + $0x20] sm:$0xff]
        %v296 = vld [vmem:[%s2 + $0x28] sm:$0xff]
        %v297 = vld [vmem:[%s2 + $0x30] sm:$0xff]
        %v298 = vld [vmem:[%s2 + $0x38] sm:$0xff]
        %vm299 = vcmask 261120
        %v301 = vsel %vm299, %v275, 0
        %v304 = vsel %vm299, %v276, 0
        %v307 = vsel %vm299, %v277, 0
        %v310 = vsel %vm299, %v278, 0
        %v313 = vsel %vm299, %v279, 0
        %v316 = vsel %vm299, %v280, 0
        %v319 = vsel %vm299, %v281, 0
        %v322 = vsel %vm299, %v282, 0
        %v325 = vsel %vm299, %v283, 0
        %v328 = vsel %vm299, %v284, 0
        %v331 = vsel %vm299, %v285, 0
        %v334 = vsel %vm299, %v286, 0
        %v337 = vsel %vm299, %v287, 0
        %v340 = vsel %vm299, %v288, 0
        %v343 = vsel %vm299, %v289, 0
        %v346 = vsel %vm299, %v290, 0
        %348 = vmatprep.subr.mxu0 %v292
        %349 = vmatpush1.msra.mxu0 %v291
        %350 = vmatprep.subr.mxu0 %v294
        %351 = vmatpush1.msra.mxu0 %v293
        %352 = vmatprep.subr.mxu0 %v296
        %353 = vmatpush1.msra.mxu0 %v295
        %354 = vmatprep.subr.mxu0 %v298
        %355 = vmatpush1.msra.mxu0 %v297
        %356 = vmatprep.subr.mxu0 0.0
        %357 = vmatpush1.msra.mxu0 0.0
        %358 = vmatprep.subr.mxu0 0.0
        %359 = vmatpush1.msra.mxu0 0.0
        %360 = vmatprep.subr.mxu0 0.0
        %361 = vmatpush1.msra.mxu0 0.0
        %362 = vmatprep.subr.mxu0 0.0
        %363 = vmatpush1.msra.mxu0 0.0
        %364 = vmatprep.subr.mxu0 0.0
        %365 = vmatpush1.msra.mxu0 0.0
        %366 = vmatprep.subr.mxu0 0.0
        %367 = vmatpush1.msra.mxu0 0.0
        %368 = vmatprep.subr.mxu0 0.0
        %369 = vmatpush1.msra.mxu0 0.0
        %370 = vmatprep.subr.mxu0 0.0
        %371 = vmatpush1.msra.mxu0 0.0
        %372 = vmatprep.subr.mxu0 0.0
        %373 = vmatpush1.msra.mxu0 0.0
        %374 = vmatprep.subr.mxu0 0.0
        %375 = vmatpush1.msra.mxu0 0.0
        %376 = vmatprep.subr.mxu0 0.0
        %377 = vmatpush1.msra.mxu0 0.0
        %378 = vmatprep.subr.mxu0 0.0
        %379 = vmatpush1.msra.mxu0 0.0
        %380 = vmatprep.subr.mxu0 0.0
        %381 = vmatpush1.msra.mxu0 0.0
        %382 = vmatprep.subr.mxu0 0.0
        %383 = vmatpush1.msra.mxu0 0.0
        %384 = vmatprep.subr.mxu0 0.0
        %385 = vmatpush1.msra.mxu0 0.0
        %386 = vmatprep.subr.mxu0 0.0
        %387 = vmatpush1.msra.mxu0 0.0
        %388 = vmatprep.subr.mxu0 0.0
        %389 = vmatpush1.msra.mxu0 0.0
        %390 = vmatprep.subr.mxu0 0.0
        %391 = vmatpush1.msra.mxu0 0.0
        %392 = vmatprep.subr.mxu0 0.0
        %393 = vmatpush1.msra.mxu0 0.0
        %394 = vmatprep.subr.mxu0 0.0
        %395 = vmatpush1.msra.mxu0 0.0
        %396 = vmatprep.subr.mxu0 0.0
        %397 = vmatpush1.msra.mxu0 0.0
        %398 = vmatprep.subr.mxu0 0.0
        %399 = vmatpush1.msra.mxu0 0.0
        %400 = vmatprep.subr.mxu0 0.0
        %401 = vmatpush1.msra.mxu0 0.0
        %402 = vmatprep.subr.mxu0 0.0
        %403 = vmatpush1.msra.mxu0 0.0
        %404 = vmatprep.subr.mxu0 0.0
        %405 = vmatpush1.msra.mxu0 0.0
        %406 = vmatprep.subr.mxu0 0.0
        %407 = vmatpush1.msra.mxu0 0.0
        %408 = vmatprep.subr.mxu0 0.0
        %409 = vmatpush1.msra.mxu0 0.0
        %410 = vmatprep.subr.mxu0 0.0
        %411 = vmatpush1.msra.mxu0 0.0
        %412 = vmatprep.mubr.f32.mxu0 0.0
        %413 = vmatmul.mubr.f32.gmra.mrb[0].mxu0 %v301
        %v414 = vpop.f32.mrb[0].mxu0
        %v415 = vadd.f32 0.0, %v414
        %v416 = vpop.f32.mrb[0].mxu0
        %v417 = vadd.f32 0.0, %v416
        %418 = vmatprep.mubr.f32.mxu0 0.0
        %419 = vmatmul.mubr.f32.gmra.mrb[0].mxu0 %v304
        %v420 = vpop.f32.mrb[0].mxu0
        %v421 = vadd.f32 0.0, %v420
        %v422 = vpop.f32.mrb[0].mxu0
        %v423 = vadd.f32 0.0, %v422
        %424 = vmatprep.mubr.f32.mxu0 0.0
        %425 = vmatmul.mubr.f32.gmra.mrb[0].mxu0 %v307
        %v426 = vpop.f32.mrb[0].mxu0
        %v427 = vadd.f32 0.0, %v426
        %v428 = vpop.f32.mrb[0].mxu0
        %v429 = vadd.f32 0.0, %v428
        %430 = vmatprep.mubr.f32.mxu0 0.0
        %431 = vmatmul.mubr.f32.gmra.mrb[0].mxu0 %v310
        %v432 = vpop.f32.mrb[0].mxu0
        %v433 = vadd.f32 0.0, %v432
        %v434 = vpop.f32.mrb[0].mxu0
        %v435 = vadd.f32 0.0, %v434
        %436 = vmatprep.mubr.f32.mxu0 0.0
        %437 = vmatmul.mubr.f32.gmra.mrb[0].mxu0 %v313
        %v438 = vpop.f32.mrb[0].mxu0
        %v439 = vadd.f32 0.0, %v438
        %v440 = vpop.f32.mrb[0].mxu0
        %v441 = vadd.f32 0.0, %v440
        %442 = vmatprep.mubr.f32.mxu0 0.0
        %443 = vmatmul.mubr.f32.gmra.mrb[0].mxu0 %v316
        %v444 = vpop.f32.mrb[0].mxu0
        %v445 = vadd.f32 0.0, %v444
        %v446 = vpop.f32.mrb[0].mxu0
        %v447 = vadd.f32 0.0, %v446
        %448 = vmatprep.mubr.f32.mxu0 0.0
        %449 = vmatmul.mubr.f32.gmra.mrb[0].mxu0 %v319
        %v450 = vpop.f32.mrb[0].mxu0
        %v451 = vadd.f32 0.0, %v450
        %v452 = vpop.f32.mrb[0].mxu0
        %v453 = vadd.f32 0.0, %v452
        %454 = vmatprep.mubr.f32.mxu0 0.0
        %455 = vmatmul.mubr.f32.gmra.mrb[0].mxu0 %v322
        %v456 = vpop.f32.mrb[0].mxu0
        %v457 = vadd.f32 0.0, %v456
        %v458 = vpop.f32.mrb[0].mxu0
        %v459 = vadd.f32 0.0, %v458
        %460 = vmatprep.mubr.f32.mxu0 0.0
        %461 = vmatmul.mubr.f32.gmra.mrb[0].mxu0 %v325
        %v462 = vpop.f32.mrb[0].mxu0
        %v463 = vadd.f32 0.0, %v462
        %v464 = vpop.f32.mrb[0].mxu0
        %v465 = vadd.f32 0.0, %v464
        %466 = vmatprep.mubr.f32.mxu0 0.0
        %467 = vmatmul.mubr.f32.gmra.mrb[0].mxu0 %v328
        %v468 = vpop.f32.mrb[0].mxu0
        %v469 = vadd.f32 0.0, %v468
        %v470 = vpop.f32.mrb[0].mxu0
        %v471 = vadd.f32 0.0, %v470
        %472 = vmatprep.mubr.f32.mxu0 0.0
        %473 = vmatmul.mubr.f32.gmra.mrb[0].mxu0 %v331
        %v474 = vpop.f32.mrb[0].mxu0
        %v475 = vadd.f32 0.0, %v474
        %v476 = vpop.f32.mrb[0].mxu0
        %v477 = vadd.f32 0.0, %v476
        %478 = vmatprep.mubr.f32.mxu0 0.0
        %479 = vmatmul.mubr.f32.gmra.mrb[0].mxu0 %v334
        %v480 = vpop.f32.mrb[0].mxu0
        %v481 = vadd.f32 0.0, %v480
        %v482 = vpop.f32.mrb[0].mxu0
        %v483 = vadd.f32 0.0, %v482
        %484 = vmatprep.mubr.f32.mxu0 0.0
        %485 = vmatmul.mubr.f32.gmra.mrb[0].mxu0 %v337
        %v486 = vpop.f32.mrb[0].mxu0
        %v487 = vadd.f32 0.0, %v486
        %v488 = vpop.f32.mrb[0].mxu0
        %v489 = vadd.f32 0.0, %v488
        %490 = vmatprep.mubr.f32.mxu0 0.0
        %491 = vmatmul.mubr.f32.gmra.mrb[0].mxu0 %v340
        %v492 = vpop.f32.mrb[0].mxu0
        %v493 = vadd.f32 0.0, %v492
        %v494 = vpop.f32.mrb[0].mxu0
        %v495 = vadd.f32 0.0, %v494
        %496 = vmatprep.mubr.f32.mxu0 0.0
        %497 = vmatmul.mubr.f32.gmra.mrb[0].mxu0 %v343
        %v498 = vpop.f32.mrb[0].mxu0
        %v499 = vadd.f32 0.0, %v498
        %v500 = vpop.f32.mrb[0].mxu0
        %v501 = vadd.f32 0.0, %v500
        %502 = vmatprep.mubr.f32.mxu0 0.0
        %503 = vmatmul.mubr.f32.gmra.mrb[0].mxu0 %v346
        %v504 = vpop.f32.mrb[0].mxu0
        %v505 = vadd.f32 0.0, %v504
        %v506 = vpop.f32.mrb[0].mxu0
        %v507 = vadd.f32 0.0, %v506
        %508 = vdwg.mxu0
        %v509 = vld [vmem:[%s272] sm:$0xff]
        %v510 = vld [vmem:[%s272 + $0x8] sm:$0xff]
        %v511 = vld [vmem:[%s272 + $0x10] sm:$0xff]
        %v512 = vld [vmem:[%s272 + $0x18] sm:$0xff]
        %v513 = vld [vmem:[%s272 + $0x20] sm:$0xff]
        %v514 = vld [vmem:[%s272 + $0x28] sm:$0xff]
        %v515 = vld [vmem:[%s272 + $0x30] sm:$0xff]
        %v516 = vld [vmem:[%s272 + $0x38] sm:$0xff]
        %v517 = vld [vmem:[%s272 + $0x40] sm:$0xff]
        %v518 = vld [vmem:[%s272 + $0x48] sm:$0xff]
        %v519 = vld [vmem:[%s272 + $0x50] sm:$0xff]
        %v520 = vld [vmem:[%s272 + $0x58] sm:$0xff]
        %v521 = vld [vmem:[%s272 + $0x60] sm:$0xff]
        %v522 = vld [vmem:[%s272 + $0x68] sm:$0xff]
        %v523 = vld [vmem:[%s272 + $0x70] sm:$0xff]
        %v524 = vld [vmem:[%s272 + $0x78] sm:$0xff]
        %v525 = vld [vmem:[%s3] sm:$0xff]
        %v526 = vld [vmem:[%s3 + $0x8] sm:$0xff]
        %v527 = vld [vmem:[%s3 + $0x10] sm:$0xff]
        %v528 = vld [vmem:[%s3 + $0x18] sm:$0xff]
        %vm529 = vcmask 130048
        %v531 = vsel %vm529, %v509, 0
        %v534 = vsel %vm529, %v510, 0
        %v537 = vsel %vm529, %v511, 0
        %v540 = vsel %vm529, %v512, 0
        %v543 = vsel %vm529, %v513, 0
        %v546 = vsel %vm529, %v514, 0
        %v549 = vsel %vm529, %v515, 0
        %v552 = vsel %vm529, %v516, 0
        %v555 = vsel %vm529, %v517, 0
        %v558 = vsel %vm529, %v518, 0
        %v561 = vsel %vm529, %v519, 0
        %v564 = vsel %vm529, %v520, 0
        %v567 = vsel %vm529, %v521, 0
        %v570 = vsel %vm529, %v522, 0
        %v573 = vsel %vm529, %v523, 0
        %v576 = vsel %vm529, %v524, 0
        %578 = vmatprep.subr.mxu0 %v526
        %579 = vmatpush1.msra.mxu0 %v525
        %580 = vmatprep.subr.mxu0 %v528
        %581 = vmatpush1.msra.mxu0 %v527
        %582 = vmatprep.subr.mxu0 0.0
        %583 = vmatpush1.msra.mxu0 0.0
        %584 = vmatprep.subr.mxu0 0.0
        %585 = vmatpush1.msra.mxu0 0.0
        %586 = vmatprep.subr.mxu0 0.0
        %587 = vmatpush1.msra.mxu0 0.0
        %588 = vmatprep.subr.mxu0 0.0
        %589 = vmatpush1.msra.mxu0 0.0
        %590 = vmatprep.subr.mxu0 0.0
        %591 = vmatpush1.msra.mxu0 0.0
        %592 = vmatprep.subr.mxu0 0.0
        %593 = vmatpush1.msra.mxu0 0.0
        %594 = vmatprep.subr.mxu0 0.0
        %595 = vmatpush1.msra.mxu0 0.0
        %596 = vmatprep.subr.mxu0 0.0
        %597 = vmatpush1.msra.mxu0 0.0
        %598 = vmatprep.subr.mxu0 0.0
        %599 = vmatpush1.msra.mxu0 0.0
        %600 = vmatprep.subr.mxu0 0.0
        %601 = vmatpush1.msra.mxu0 0.0
        %602 = vmatprep.subr.mxu0 0.0
        %603 = vmatpush1.msra.mxu0 0.0
        %604 = vmatprep.subr.mxu0 0.0
        %605 = vmatpush1.msra.mxu0 0.0
        %606 = vmatprep.subr.mxu0 0.0
        %607 = vmatpush1.msra.mxu0 0.0
        %608 = vmatprep.subr.mxu0 0.0
        %609 = vmatpush1.msra.mxu0 0.0
        %610 = vmatprep.subr.mxu0 0.0
        %611 = vmatpush1.msra.mxu0 0.0
        %612 = vmatprep.subr.mxu0 0.0
        %613 = vmatpush1.msra.mxu0 0.0
        %614 = vmatprep.subr.mxu0 0.0
        %615 = vmatpush1.msra.mxu0 0.0
        %616 = vmatprep.subr.mxu0 0.0
        %617 = vmatpush1.msra.mxu0 0.0
        %618 = vmatprep.subr.mxu0 0.0
        %619 = vmatpush1.msra.mxu0 0.0
        %620 = vmatprep.subr.mxu0 0.0
        %621 = vmatpush1.msra.mxu0 0.0
        %622 = vmatprep.subr.mxu0 0.0
        %623 = vmatpush1.msra.mxu0 0.0
        %624 = vmatprep.subr.mxu0 0.0
        %625 = vmatpush1.msra.mxu0 0.0
        %626 = vmatprep.subr.mxu0 0.0
        %627 = vmatpush1.msra.mxu0 0.0
        %628 = vmatprep.subr.mxu0 0.0
        %629 = vmatpush1.msra.mxu0 0.0
        %630 = vmatprep.subr.mxu0 0.0
        %631 = vmatpush1.msra.mxu0 0.0
        %632 = vmatprep.subr.mxu0 0.0
        %633 = vmatpush1.msra.mxu0 0.0
        %634 = vmatprep.subr.mxu0 0.0
        %635 = vmatpush1.msra.mxu0 0.0
        %636 = vmatprep.subr.mxu0 0.0
        %637 = vmatpush1.msra.mxu0 0.0
        %638 = vmatprep.subr.mxu0 0.0
        %639 = vmatpush1.msra.mxu0 0.0
        %640 = vmatprep.subr.mxu0 0.0
        %641 = vmatpush1.msra.mxu0 0.0
        %642 = vmatprep.mubr.f32.mxu0 0.0
        %643 = vmatmul.mubr.f32.gmra.mrb[0].mxu0 %v531
        %v644 = vpop.f32.mrb[0].mxu0
        %v645 = vadd.f32 0.0, %v644
        %v646 = vpop.f32.mrb[0].mxu0
        %v647 = vadd.f32 0.0, %v646
        %648 = vmatprep.mubr.f32.mxu0 0.0
        %649 = vmatmul.mubr.f32.gmra.mrb[0].mxu0 %v534
        %v650 = vpop.f32.mrb[0].mxu0
        %v651 = vadd.f32 0.0, %v650
        %v652 = vpop.f32.mrb[0].mxu0
        %v653 = vadd.f32 0.0, %v652
        %654 = vmatprep.mubr.f32.mxu0 0.0
        %655 = vmatmul.mubr.f32.gmra.mrb[0].mxu0 %v537
        %v656 = vpop.f32.mrb[0].mxu0
        %v657 = vadd.f32 0.0, %v656
        %v658 = vpop.f32.mrb[0].mxu0
        %v659 = vadd.f32 0.0, %v658
        %660 = vmatprep.mubr.f32.mxu0 0.0
        %661 = vmatmul.mubr.f32.gmra.mrb[0].mxu0 %v540
        %v662 = vpop.f32.mrb[0].mxu0
        %v663 = vadd.f32 0.0, %v662
        %v664 = vpop.f32.mrb[0].mxu0
        %v665 = vadd.f32 0.0, %v664
        %666 = vmatprep.mubr.f32.mxu0 0.0
        %667 = vmatmul.mubr.f32.gmra.mrb[0].mxu0 %v543
        %v668 = vpop.f32.mrb[0].mxu0
        %v669 = vadd.f32 0.0, %v668
        %v670 = vpop.f32.mrb[0].mxu0
        %v671 = vadd.f32 0.0, %v670
        %672 = vmatprep.mubr.f32.mxu0 0.0
        %673 = vmatmul.mubr.f32.gmra.mrb[0].mxu0 %v546
        %v674 = vpop.f32.mrb[0].mxu0
        %v675 = vadd.f32 0.0, %v674
        %v676 = vpop.f32.mrb[0].mxu0
        %v677 = vadd.f32 0.0, %v676
        %678 = vmatprep.mubr.f32.mxu0 0.0
        %679 = vmatmul.mubr.f32.gmra.mrb[0].mxu0 %v549
        %v680 = vpop.f32.mrb[0].mxu0
        %v681 = vadd.f32 0.0, %v680
        %v682 = vpop.f32.mrb[0].mxu0
        %v683 = vadd.f32 0.0, %v682
        %684 = vmatprep.mubr.f32.mxu0 0.0
        %685 = vmatmul.mubr.f32.gmra.mrb[0].mxu0 %v552
        %v686 = vpop.f32.mrb[0].mxu0
        %v687 = vadd.f32 0.0, %v686
        %v688 = vpop.f32.mrb[0].mxu0
        %v689 = vadd.f32 0.0, %v688
        %690 = vmatprep.mubr.f32.mxu0 0.0
        %691 = vmatmul.mubr.f32.gmra.mrb[0].mxu0 %v555
        %v692 = vpop.f32.mrb[0].mxu0
        %v693 = vadd.f32 0.0, %v692
        %v694 = vpop.f32.mrb[0].mxu0
        %v695 = vadd.f32 0.0, %v694
        %696 = vmatprep.mubr.f32.mxu0 0.0
        %697 = vmatmul.mubr.f32.gmra.mrb[0].mxu0 %v558
        %v698 = vpop.f32.mrb[0].mxu0
        %v699 = vadd.f32 0.0, %v698
        %v700 = vpop.f32.mrb[0].mxu0
        %v701 = vadd.f32 0.0, %v700
        %702 = vmatprep.mubr.f32.mxu0 0.0
        %703 = vmatmul.mubr.f32.gmra.mrb[0].mxu0 %v561
        %v704 = vpop.f32.mrb[0].mxu0
        %v705 = vadd.f32 0.0, %v704
        %v706 = vpop.f32.mrb[0].mxu0
        %v707 = vadd.f32 0.0, %v706
        %708 = vmatprep.mubr.f32.mxu0 0.0
        %709 = vmatmul.mubr.f32.gmra.mrb[0].mxu0 %v564
        %v710 = vpop.f32.mrb[0].mxu0
        %v711 = vadd.f32 0.0, %v710
        %v712 = vpop.f32.mrb[0].mxu0
        %v713 = vadd.f32 0.0, %v712
        %714 = vmatprep.mubr.f32.mxu0 0.0
        %715 = vmatmul.mubr.f32.gmra.mrb[0].mxu0 %v567
        %v716 = vpop.f32.mrb[0].mxu0
        %v717 = vadd.f32 0.0, %v716
        %v718 = vpop.f32.mrb[0].mxu0
        %v719 = vadd.f32 0.0, %v718
        %720 = vmatprep.mubr.f32.mxu0 0.0
        %721 = vmatmul.mubr.f32.gmra.mrb[0].mxu0 %v570
        %v722 = vpop.f32.mrb[0].mxu0
        %v723 = vadd.f32 0.0, %v722
        %v724 = vpop.f32.mrb[0].mxu0
        %v725 = vadd.f32 0.0, %v724
        %726 = vmatprep.mubr.f32.mxu0 0.0
        %727 = vmatmul.mubr.f32.gmra.mrb[0].mxu0 %v573
        %v728 = vpop.f32.mrb[0].mxu0
        %v729 = vadd.f32 0.0, %v728
        %v730 = vpop.f32.mrb[0].mxu0
        %v731 = vadd.f32 0.0, %v730
        %732 = vmatprep.mubr.f32.mxu0 0.0
        %733 = vmatmul.mubr.f32.gmra.mrb[0].mxu0 %v576
        %v734 = vpop.f32.mrb[0].mxu0
        %v735 = vadd.f32 0.0, %v734
        %v736 = vpop.f32.mrb[0].mxu0
        %v737 = vadd.f32 0.0, %v736
        %738 = vdwg.mxu0
        %v739 = vadd.f32 %v415, %v645
        %v740 = vadd.f32 %v421, %v651
        %v741 = vadd.f32 %v427, %v657
        %v742 = vadd.f32 %v433, %v663
        %v743 = vadd.f32 %v439, %v669
        %v744 = vadd.f32 %v445, %v675
        %v745 = vadd.f32 %v451, %v681
        %v746 = vadd.f32 %v457, %v687
        %v747 = vadd.f32 %v463, %v693
        %v748 = vadd.f32 %v469, %v699
        %v749 = vadd.f32 %v475, %v705
        %v750 = vadd.f32 %v481, %v711
        %v751 = vadd.f32 %v487, %v717
        %v752 = vadd.f32 %v493, %v723
        %v753 = vadd.f32 %v499, %v729
        %v754 = vadd.f32 %v505, %v735
        %v755 = vmul.f32 %v417, %v647
        %v756 = vmul.f32 %v423, %v653
        %v757 = vmul.f32 %v429, %v659
        %v758 = vmul.f32 %v435, %v665
        %v759 = vmul.f32 %v441, %v671
        %v760 = vmul.f32 %v447, %v677
        %v761 = vmul.f32 %v453, %v683
        %v762 = vmul.f32 %v459, %v689
        %v763 = vmul.f32 %v465, %v695
        %v764 = vmul.f32 %v471, %v701
        %v765 = vmul.f32 %v477, %v707
        %v766 = vmul.f32 %v483, %v713
        %v767 = vmul.f32 %v489, %v719
        %v768 = vmul.f32 %v495, %v725
        %v769 = vmul.f32 %v501, %v731
        %v770 = vmul.f32 %v507, %v737
        %v771 = vld [vmem:[%s4] sm:$0xff]
        %v772 = vld [vmem:[%s4 + $0x8] sm:$0xff]
        %v773 = vld [vmem:[%s4 + $0x10] sm:$0xff]
        %v774 = vld [vmem:[%s4 + $0x18] sm:$0xff]
        %v775 = vld [vmem:[%s4 + $0x20] sm:$0xff]
        %v776 = vld [vmem:[%s4 + $0x28] sm:$0xff]
        %v777 = vld [vmem:[%s4 + $0x30] sm:$0xff]
        %v778 = vld [vmem:[%s4 + $0x38] sm:$0xff]
        %vm779 = vcmask 523264
        %v781 = vsel %vm779, %v755, 0
        %v784 = vsel %vm779, %v756, 0
        %v787 = vsel %vm779, %v757, 0
        %v790 = vsel %vm779, %v758, 0
        %v793 = vsel %vm779, %v759, 0
        %v796 = vsel %vm779, %v760, 0
        %v799 = vsel %vm779, %v761, 0
        %v802 = vsel %vm779, %v762, 0
        %v805 = vsel %vm779, %v763, 0
        %v808 = vsel %vm779, %v764, 0
        %v811 = vsel %vm779, %v765, 0
        %v814 = vsel %vm779, %v766, 0
        %v817 = vsel %vm779, %v767, 0
        %v820 = vsel %vm779, %v768, 0
        %v823 = vsel %vm779, %v769, 0
        %v826 = vsel %vm779, %v770, 0
        %828 = vmatprep.subr.mxu0 0.0
        %829 = vmatpush1.msra.mxu0 %v771
        %830 = vmatprep.subr.mxu0 0.0
        %831 = vmatpush1.msra.mxu0 %v772
        %832 = vmatprep.subr.mxu0 0.0
        %833 = vmatpush1.msra.mxu0 %v773
        %834 = vmatprep.subr.mxu0 0.0
        %835 = vmatpush1.msra.mxu0 %v774
        %836 = vmatprep.subr.mxu0 0.0
        %837 = vmatpush1.msra.mxu0 %v775
        %838 = vmatprep.subr.mxu0 0.0
        %839 = vmatpush1.msra.mxu0 %v776
        %840 = vmatprep.subr.mxu0 0.0
        %841 = vmatpush1.msra.mxu0 %v777
        %842 = vmatprep.subr.mxu0 0.0
        %843 = vmatpush1.msra.mxu0 %v778
        %844 = vmatprep.subr.mxu0 0.0
        %845 = vmatpush1.msra.mxu0 0.0
        %846 = vmatprep.subr.mxu0 0.0
        %847 = vmatpush1.msra.mxu0 0.0
        %848 = vmatprep.subr.mxu0 0.0
        %849 = vmatpush1.msra.mxu0 0.0
        %850 = vmatprep.subr.mxu0 0.0
        %851 = vmatpush1.msra.mxu0 0.0
        %852 = vmatprep.subr.mxu0 0.0
        %853 = vmatpush1.msra.mxu0 0.0
        %854 = vmatprep.subr.mxu0 0.0
        %855 = vmatpush1.msra.mxu0 0.0
        %856 = vmatprep.subr.mxu0 0.0
        %857 = vmatpush1.msra.mxu0 0.0
        %858 = vmatprep.subr.mxu0 0.0
        %859 = vmatpush1.msra.mxu0 0.0
        %860 = vmatprep.subr.mxu0 0.0
        %861 = vmatpush1.msra.mxu0 0.0
        %862 = vmatprep.subr.mxu0 0.0
        %863 = vmatpush1.msra.mxu0 0.0
        %864 = vmatprep.subr.mxu0 0.0
        %865 = vmatpush1.msra.mxu0 0.0
        %866 = vmatprep.subr.mxu0 0.0
        %867 = vmatpush1.msra.mxu0 0.0
        %868 = vmatprep.subr.mxu0 0.0
        %869 = vmatpush1.msra.mxu0 0.0
        %870 = vmatprep.subr.mxu0 0.0
        %871 = vmatpush1.msra.mxu0 0.0
        %872 = vmatprep.subr.mxu0 0.0
        %873 = vmatpush1.msra.mxu0 0.0
        %874 = vmatprep.subr.mxu0 0.0
        %875 = vmatpush1.msra.mxu0 0.0
        %876 = vmatprep.subr.mxu0 0.0
        %877 = vmatpush1.msra.mxu0 0.0
        %878 = vmatprep.subr.mxu0 0.0
        %879 = vmatpush1.msra.mxu0 0.0
        %880 = vmatprep.subr.mxu0 0.0
        %881 = vmatpush1.msra.mxu0 0.0
        %882 = vmatprep.subr.mxu0 0.0
        %883 = vmatpush1.msra.mxu0 0.0
        %884 = vmatprep.subr.mxu0 0.0
        %885 = vmatpush1.msra.mxu0 0.0
        %886 = vmatprep.subr.mxu0 0.0
        %887 = vmatpush1.msra.mxu0 0.0
        %888 = vmatprep.subr.mxu0 0.0
        %889 = vmatpush1.msra.mxu0 0.0
        %890 = vmatprep.subr.mxu0 0.0
        %891 = vmatpush1.msra.mxu0 0.0
        %892 = vmatprep.mubr.f32.mxu0 0.0
        %893 = vmatmul.mubr.f32.gmra.mrb[0].mxu0 %v781
        %v894 = vpop.f32.mrb[0].mxu0
        %v895 = vadd.f32 %v739, %v894
        %v896 = vpop.f32.mrb[0].mxu0
        %897 = vmatprep.mubr.f32.mxu0 0.0
        %898 = vmatmul.mubr.f32.gmra.mrb[0].mxu0 %v784
        %v899 = vpop.f32.mrb[0].mxu0
        %v900 = vadd.f32 %v740, %v899
        %v901 = vpop.f32.mrb[0].mxu0
        %902 = vmatprep.mubr.f32.mxu0 0.0
        %903 = vmatmul.mubr.f32.gmra.mrb[0].mxu0 %v787
        %v904 = vpop.f32.mrb[0].mxu0
        %v905 = vadd.f32 %v741, %v904
        %v906 = vpop.f32.mrb[0].mxu0
        %907 = vmatprep.mubr.f32.mxu0 0.0
        %908 = vmatmul.mubr.f32.gmra.mrb[0].mxu0 %v790
        %v909 = vpop.f32.mrb[0].mxu0
        %v910 = vadd.f32 %v742, %v909
        %v911 = vpop.f32.mrb[0].mxu0
        %912 = vmatprep.mubr.f32.mxu0 0.0
        %913 = vmatmul.mubr.f32.gmra.mrb[0].mxu0 %v793
        %v914 = vpop.f32.mrb[0].mxu0
        %v915 = vadd.f32 %v743, %v914
        %v916 = vpop.f32.mrb[0].mxu0
        %917 = vmatprep.mubr.f32.mxu0 0.0
        %918 = vmatmul.mubr.f32.gmra.mrb[0].mxu0 %v796
        %v919 = vpop.f32.mrb[0].mxu0
        %v920 = vadd.f32 %v744, %v919
        %v921 = vpop.f32.mrb[0].mxu0
        %922 = vmatprep.mubr.f32.mxu0 0.0
        %923 = vmatmul.mubr.f32.gmra.mrb[0].mxu0 %v799
        %v924 = vpop.f32.mrb[0].mxu0
        %v925 = vadd.f32 %v745, %v924
        %v926 = vpop.f32.mrb[0].mxu0
        %927 = vmatprep.mubr.f32.mxu0 0.0
        %928 = vmatmul.mubr.f32.gmra.mrb[0].mxu0 %v802
        %v929 = vpop.f32.mrb[0].mxu0
        %v930 = vadd.f32 %v746, %v929
        %v931 = vpop.f32.mrb[0].mxu0
        %932 = vmatprep.mubr.f32.mxu0 0.0
        %933 = vmatmul.mubr.f32.gmra.mrb[0].mxu0 %v805
        %v934 = vpop.f32.mrb[0].mxu0
        %v935 = vadd.f32 %v747, %v934
        %v936 = vpop.f32.mrb[0].mxu0
        %937 = vmatprep.mubr.f32.mxu0 0.0
        %938 = vmatmul.mubr.f32.gmra.mrb[0].mxu0 %v808
        %v939 = vpop.f32.mrb[0].mxu0
        %v940 = vadd.f32 %v748, %v939
        %v941 = vpop.f32.mrb[0].mxu0
        %942 = vmatprep.mubr.f32.mxu0 0.0
        %943 = vmatmul.mubr.f32.gmra.mrb[0].mxu0 %v811
        %v944 = vpop.f32.mrb[0].mxu0
        %v945 = vadd.f32 %v749, %v944
        %v946 = vpop.f32.mrb[0].mxu0
        %947 = vmatprep.mubr.f32.mxu0 0.0
        %948 = vmatmul.mubr.f32.gmra.mrb[0].mxu0 %v814
        %v949 = vpop.f32.mrb[0].mxu0
        %v950 = vadd.f32 %v750, %v949
        %v951 = vpop.f32.mrb[0].mxu0
        %952 = vmatprep.mubr.f32.mxu0 0.0
        %953 = vmatmul.mubr.f32.gmra.mrb[0].mxu0 %v817
        %v954 = vpop.f32.mrb[0].mxu0
        %v955 = vadd.f32 %v751, %v954
        %v956 = vpop.f32.mrb[0].mxu0
        %957 = vmatprep.mubr.f32.mxu0 0.0
        %958 = vmatmul.mubr.f32.gmra.mrb[0].mxu0 %v820
        %v959 = vpop.f32.mrb[0].mxu0
        %v960 = vadd.f32 %v752, %v959
        %v961 = vpop.f32.mrb[0].mxu0
        %962 = vmatprep.mubr.f32.mxu0 0.0
        %963 = vmatmul.mubr.f32.gmra.mrb[0].mxu0 %v823
        %v964 = vpop.f32.mrb[0].mxu0
        %v965 = vadd.f32 %v753, %v964
        %v966 = vpop.f32.mrb[0].mxu0
        %967 = vmatprep.mubr.f32.mxu0 0.0
        %968 = vmatmul.mubr.f32.gmra.mrb[0].mxu0 %v826
        %v969 = vpop.f32.mrb[0].mxu0
        %v970 = vadd.f32 %v754, %v969
        %v971 = vpop.f32.mrb[0].mxu0
        %972 = vdwg.mxu0
        %v973 = vld [vmem:[%s5] sm:$0x1]
        %v975 = vlaneseq
        %v976 = vshrl.u32 %v975, 7
        %v977 = vsub.s32 0, %v976
        %v978 = vrot.slane %v973, %v977
        %v980 = vadd.f32 %v895, %v978
        %v981 = vadd.f32 %v900, %v978
        %v982 = vadd.f32 %v905, %v978
        %v983 = vadd.f32 %v910, %v978
        %v984 = vadd.f32 %v915, %v978
        %v985 = vadd.f32 %v920, %v978
        %v986 = vadd.f32 %v925, %v978
        %v987 = vadd.f32 %v930, %v978
        %v988 = vadd.f32 %v935, %v978
        %v989 = vadd.f32 %v940, %v978
        %v990 = vadd.f32 %v945, %v978
        %v991 = vadd.f32 %v950, %v978
        %v992 = vadd.f32 %v955, %v978
        %v993 = vadd.f32 %v960, %v978
        %v994 = vadd.f32 %v965, %v978
        %v995 = vadd.f32 %v970, %v978
        %996 = vst [vmem:[%s261] sm:$0xff] %v980
        %997 = vst [vmem:[%s261 + $0x8] sm:$0xff] %v981
        %998 = vst [vmem:[%s261 + $0x10] sm:$0xff] %v982
        %999 = vst [vmem:[%s261 + $0x18] sm:$0xff] %v983
        %1000 = vst [vmem:[%s261 + $0x20] sm:$0xff] %v984
        %1001 = vst [vmem:[%s261 + $0x28] sm:$0xff] %v985
        %1002 = vst [vmem:[%s261 + $0x30] sm:$0xff] %v986
        %1003 = vst [vmem:[%s261 + $0x38] sm:$0xff] %v987
        %1004 = vst [vmem:[%s261 + $0x40] sm:$0xff] %v988
        %1005 = vst [vmem:[%s261 + $0x48] sm:$0xff] %v989
        %1006 = vst [vmem:[%s261 + $0x50] sm:$0xff] %v990
        %1007 = vst [vmem:[%s261 + $0x58] sm:$0xff] %v991
        %1008 = vst [vmem:[%s261 + $0x60] sm:$0xff] %v992
        %1009 = vst [vmem:[%s261 + $0x68] sm:$0xff] %v993
        %1010 = vst [vmem:[%s261 + $0x70] sm:$0xff] %v994
        %1011 = vst [vmem:[%s261 + $0x78] sm:$0xff] %v995
        %s1012 = sand.u32 %s164, 1
        %s1013 = scalar_lea.sflag [#allocation3], %s1012
        %s1014 = sand.u32 %s164, 1
        %s1015 = smul.addr %s1014, 128
        %s1016 = scalar_lea.vmem [#allocation2], %s1015
        // Predicated region
        $region45: #{tpu_custom_call.1} parent=43 // pred_check
          %p1017 = pneg %p174
        $region46: #{tpu_custom_call.1} parent=43 // pred_check_branch
          %1019 = sbr.rel (%p1017) target = $region48
        $region47: #{tpu_custom_call.1} parent=43 // pred_region
          %s1020 = smul.u32 16, %s20
          %s1022 = ssub.s32 2048, 2048
          %1023 = vsyncadd %s1013, %s1022
          %s1024 = smul.addr %s1020, 128
          %s1025 = scalar_lea.hbm %s6, %s1024
          %s1026 = sshll.u32 %s1016, 4
          %s1027 = int_to_ptr.vmem [resolvable:$true] %s1026
          %1032 = dma.vmem_to_hbm [thread:$0]  %s1027, 2048, %s1025, %s1013, 128, 128, 8
        $region48: #{tpu_custom_call.1} parent=43 // pred_fallthru
          _
      $region44: #{tpu_custom_call.1} parent=5 // pred_fallthru
        _
      %p1033 = scmp.le.s32.totalorder 2, %s15
      // Predicated region
      $region49: #{tpu_custom_call.1} parent=5 // pred_check
        %p1034 = pneg %p1033
      $region50: #{tpu_custom_call.1} parent=5 // pred_check_branch
        %1036 = sbr.rel (%p1034) target = $region52
      $region51: #{tpu_custom_call.1} parent=5 // pred_region
        %s1037 = ssub.s32 %s15, 2
        // Predicated region
        $region53: #{tpu_custom_call.1} parent=51 // pred_check
          %p1038 = pneg %p180
        $region54: #{tpu_custom_call.1} parent=51 // pred_check_branch
          %1040 = sbr.rel (%p1038) target = $region56
        $region55: #{tpu_custom_call.1} parent=51 // pred_region
          %s1041 = sand.u32 %s165, 1
          %s1042 = scalar_lea.sflag [#allocation3], %s1041
          %s1043 = sand.u32 %s165, 1
          %s1044 = smul.addr %s1043, 128
          %s1045 = scalar_lea.vmem [#allocation2], %s1044
          %1046 = dma.done %s1042, 2048
        $region56: #{tpu_custom_call.1} parent=51 // pred_fallthru
          _
      $region52: #{tpu_custom_call.1} parent=5 // pred_fallthru
        _
    $region6: #{tpu_custom_call.1} parent=1 // loop_footer
      %s19 = sadd.s32 1, %s15
    $region7: #{tpu_custom_call.1} parent=1 // loop_footer_branch
      %14 = sbr.rel target = $region3
    $region8: #{tpu_custom_call.1} parent=1 // loop_exit
      _
    %1047 = vsyncpa [#allocation3], 1
    %s1048 = scalar_lea.sflag [#allocation3], 1
    %1049 = vsyncpa %s1048, 1

</llo_original>
